<compile_context>
chip_gen: v6e
topology: v6e:2x2x1
jax: 0.10.0
libtpu: 0.0.40
codegen_flags: <defaults>
</compile_context>

<pallas_src>
import jax
import jax.numpy as jnp
from jax.experimental import pallas as pl
from jax.experimental.pallas import tpu as pltpu


def _metrics_kernel(nreal_ref,                                   # scalar prefetch (SMEM)
                    atom_ref, acol_ref, edge_ref,                # inputs (VMEM tiles)
                    n_tgt_ref, node_tgt_ref, edge_tgt_ref,
                    n_dist_ref, node_dist_ref, edge_dist_ref,    # outputs (VMEM)
                    n_mae_ref, node_mae_ref, edge_mae_ref,
                    n_acc, node_acc, edge_acc, tri_ref):         # scratch
    step = pl.program_id(0)
    last = pl.num_programs(0) - 1

    n_bins = n_acc.shape[1]
    kx = node_acc.shape[1]
    ke = edge_acc.shape[1]
    n_nodes = tri_ref.shape[1]

    @pl.when(step == 0)
    def _init():
        n_acc[...] = jnp.zeros_like(n_acc)
        node_acc[...] = jnp.zeros_like(node_acc)
        edge_acc[...] = jnp.zeros_like(edge_acc)
        # Hoisted strict-upper-triangle mask: built once, reused every step.
        row_i = jax.lax.broadcasted_iota(jnp.int32, (1, n_nodes, n_nodes), 1)
        col_i = jax.lax.broadcasted_iota(jnp.int32, (1, n_nodes, n_nodes), 2)
        tri_ref[...] = (col_i > row_i).astype(jnp.int32)

    atom = atom_ref[...]                        # (TB, N)    int32, -1 == padding node
    acol = acol_ref[...]                        # (TB, 1, N) same HBM data, column view
    edges = edge_ref[...].astype(jnp.int32)     # (TB, N, N) int8 in HBM, widened once

    tb = atom.shape[0]

    # Ragged-tail mask: grid is cdiv(B, TB), so molecules at global index
    # >= n_real in the last block are DMA garbage and must be masked out of
    # every histogram.
    mol_idx = step * tb + jax.lax.broadcasted_iota(jnp.int32, (tb, 1), 0)
    mol_real = mol_idx < nreal_ref[0]                            # (TB, 1) bool
    atom = jnp.where(mol_real, atom, -1)                         # garbage rows -> all padding

    # ---- GeneratedNDistribution: per-molecule node-count histogram ---------
    valid = (atom >= 0).astype(jnp.int32)
    n_per = jnp.sum(valid, axis=1, keepdims=True)                # (TB, 1)
    lane_n = jax.lax.broadcasted_iota(jnp.int32, (tb, n_bins), 1)
    n_onehot = jnp.logical_and(n_per == lane_n, mol_real).astype(jnp.int32)
    n_acc[...] += jnp.sum(n_onehot, axis=0, keepdims=True)       # (1, n_bins)

    # ---- GeneratedNodesDistribution: atom-type histogram -------------------
    lane_x = jax.lax.broadcasted_iota(jnp.int32, (1, kx), 1)
    node_hist = jnp.zeros((1, kx), jnp.int32)
    for k in range(kx):                         # kx is tiny -> cheap unroll
        cnt = jnp.sum((atom == k).astype(jnp.int32))             # -1 padding never matches
        node_hist = node_hist + jnp.where(lane_x == k, cnt, 0)
    node_acc[...] += node_hist

    # ---- GeneratedEdgesDistribution: strict upper triangle, valid pairs ----
    # Column validity + ragged-tail mask are built on the tiny (TB,1,N) view.
    # Padding nodes are a contiguous tail, so for j > i, valid[j] => valid[i]
    # and row validity is implied.  The B*N*N tensor is touched exactly once.
    col_mol = step * tb + jax.lax.broadcasted_iota(jnp.int32, acol.shape, 0)
    col_ok = (acol >= 0) & (col_mol < nreal_ref[0])              # (TB, 1, N)
    keep = col_ok & (tri_ref[...] > 0)                           # -> (TB, N, N)
    masked = jnp.where(keep, edges, jnp.int32(-1))
    lane_e = jax.lax.broadcasted_iota(jnp.int32, (1, ke), 1)
    edge_hist = jnp.zeros((1, ke), jnp.int32)
    for k in range(ke):                         # ke is tiny -> cheap unroll
        cnt = jnp.sum((masked == k).astype(jnp.int32))           # exact integer counts
        edge_hist = edge_hist + jnp.where(lane_e == k, cnt, 0)
    edge_acc[...] += edge_hist

    # ---- normalize + HistogramsMAE only once, on the last grid step --------
    @pl.when(step == last)
    def _finalize():
        def normalized(acc_ref):
            h = acc_ref[...].astype(jnp.float32)
            tot = jnp.maximum(jnp.sum(h), jnp.float32(1.0))      # guard empty histograms
            return h / tot

        n_dist = normalized(n_acc)
        node_dist = normalized(node_acc)
        edge_dist = normalized(edge_acc)

        n_dist_ref[...] = n_dist
        node_dist_ref[...] = node_dist
        edge_dist_ref[...] = edge_dist

        n_mae_ref[...] = (jnp.sum(jnp.abs(n_dist - n_tgt_ref[...]), keepdims=True)
                          / jnp.float32(n_bins))
        node_mae_ref[...] = (jnp.sum(jnp.abs(node_dist - node_tgt_ref[...]), keepdims=True)
                             / jnp.float32(kx))
        edge_mae_ref[...] = (jnp.sum(jnp.abs(edge_dist - edge_tgt_ref[...]), keepdims=True)
                             / jnp.float32(ke))


def _round_up(v, m):
    return ((v + m - 1) // m) * m


def _pick_batch_tile(n, edge_itemsize, budget_bytes):
    """Molecules per grid step whose layout-padded VMEM blocks fit the budget."""
    n128 = _round_up(n, 128)
    atom_b = 4 * n128                           # (TB, N) int32 row
    acol_b = 4 * 8 * n128                       # (TB, 1, N) int32: (8, n128) slab / molecule
    sub = 8 * (4 // edge_itemsize)              # sublane tiling: 8 (int32) / 32 (int8)
    edge_b = edge_itemsize * _round_up(n, sub) * n128   # (TB, N, N) slab / molecule
    return max(1, int(budget_bytes) // (atom_b + acol_b + edge_b))


def sampling_molecular_metrics(atom_types, edge_types,
                               n_target_dist, node_target_dist, edge_target_dist,
                               *, tile_rows=None,
                               vmem_block_budget=16 * 1024 * 1024,
                               vmem_limit_bytes=48 * 1024 * 1024):
    """Pallas equivalent of SamplingMolecularMetrics.forward's metric math.

    atom_types : [B, N] int, -1 marks padding nodes; padding must be a
                 contiguous tail (standard dense batching of molecules).
    edge_types : [B, N, N] int, symmetric, zero diagonal.  Pass it stored as
                 int8 to quarter HBM traffic / VMEM of the dominant tile.
    Returns (n_dist, node_dist, edge_dist, n_mae, node_mae, edge_mae).
    """
    atom_types = atom_types.astype(jnp.int32)
    # Use the caller's storage dtype; only fall back to int32 for exotic types
    # (casting int32 -> int8 here would itself cost a full HBM copy).
    if edge_types.dtype not in (jnp.dtype(jnp.int8), jnp.dtype(jnp.int32)):
        edge_types = edge_types.astype(jnp.int32)
    B, N = atom_types.shape

    n_bins = int(n_target_dist.shape[0])
    kx = int(node_target_dist.shape[0])
    ke = int(edge_target_dist.shape[0])
    if N > n_bins - 1:
        raise ValueError(f"molecules may have up to {N} nodes but the size "
                         f"histogram only has {n_bins} bins")
    if ke > 127:
        raise ValueError("edge-type codes must fit in int8")

    e_item = edge_types.dtype.itemsize
    tb_req = int(tile_rows) if tile_rows is not None else _pick_batch_tile(
        N, e_item, vmem_block_budget)
    if tb_req >= B:
        TB = B
    else:
        TB = min(max(8, (tb_req // 8) * 8), B)  # 2nd-to-last block dim must be 8-aligned
    num_tiles = pl.cdiv(B, TB)

    # No batch padding: the ragged last block is masked in-kernel, so the
    # dominant B*N*N tensor is read from HBM exactly once and never copied.
    atom_col = atom_types.reshape(B, 1, N)      # free alias of the same HBM buffer
    n_real = jnp.array([B], dtype=jnp.int32)
    n_tgt = n_target_dist.reshape(1, n_bins).astype(jnp.float32)
    node_tgt = node_target_dist.reshape(1, kx).astype(jnp.float32)
    edge_tgt = edge_target_dist.reshape(1, ke).astype(jnp.float32)

    out_shapes = (
        jax.ShapeDtypeStruct((1, n_bins), jnp.float32),   # n distribution
        jax.ShapeDtypeStruct((1, kx), jnp.float32),       # node distribution
        jax.ShapeDtypeStruct((1, ke), jnp.float32),       # edge distribution
        jax.ShapeDtypeStruct((1, 1), jnp.float32),        # n MAE
        jax.ShapeDtypeStruct((1, 1), jnp.float32),        # node MAE
        jax.ShapeDtypeStruct((1, 1), jnp.float32),        # edge MAE
    )

    grid_spec = pltpu.PrefetchScalarGridSpec(
        num_scalar_prefetch=1,
        grid=(num_tiles,),
        in_specs=[
            pl.BlockSpec((TB, N), lambda i, nb: (i, 0)),
            pl.BlockSpec((TB, 1, N), lambda i, nb: (i, 0, 0)),
            pl.BlockSpec((TB, N, N), lambda i, nb: (i, 0, 0)),
            pl.BlockSpec((1, n_bins), lambda i, nb: (0, 0)),
            pl.BlockSpec((1, kx), lambda i, nb: (0, 0)),
            pl.BlockSpec((1, ke), lambda i, nb: (0, 0)),
        ],
        out_specs=(
            pl.BlockSpec((1, n_bins), lambda i, nb: (0, 0)),
            pl.BlockSpec((1, kx), lambda i, nb: (0, 0)),
            pl.BlockSpec((1, ke), lambda i, nb: (0, 0)),
            pl.BlockSpec((1, 1), lambda i, nb: (0, 0)),
            pl.BlockSpec((1, 1), lambda i, nb: (0, 0)),
            pl.BlockSpec((1, 1), lambda i, nb: (0, 0)),
        ),
        scratch_shapes=[
            pltpu.VMEM((1, n_bins), jnp.int32),
            pltpu.VMEM((1, kx), jnp.int32),
            pltpu.VMEM((1, ke), jnp.int32),
            pltpu.VMEM((1, N, N), jnp.int32),     # hoisted strict-upper-tri mask
        ],
    )

    cost = pl.CostEstimate(
        flops=int(B) * (N * N * (2 * ke + 4) + N * (2 * kx + 8)),
        transcendentals=0,
        bytes_accessed=int(B) * (N * N * e_item + 8 * N)
                       + 8 * (n_bins + kx + ke) + 32,
    )

    fn = pl.pallas_call(
        _metrics_kernel,
        grid_spec=grid_spec,
        out_shape=out_shapes,
        compiler_params=pltpu.CompilerParams(
            dimension_semantics=("arbitrary",),            # batch axis reduces into scratch
            vmem_limit_bytes=int(vmem_limit_bytes),        # safe on v5e/v6e/v7x (<= 48 MiB)
        ),
        cost_estimate=cost,
    )
    # TODO(synk): on v7x, shard the batch axis across both TensorCores
    # (core-parallel leading grid axis + per-core partial histograms summed in JAX).
    return fn(n_real, atom_types, atom_col, edge_types, n_tgt, node_tgt, edge_tgt)


def _reference_metrics(atom, edge, n_tgt, node_tgt, edge_tgt):
    """Pure numpy re-implementation of the module's metric math (for checking)."""
    import numpy as np
    atom = np.asarray(atom)
    edge = np.asarray(edge)
    n_tgt = np.asarray(n_tgt, np.float64)
    node_tgt = np.asarray(node_tgt, np.float64)
    edge_tgt = np.asarray(edge_tgt, np.float64)
    n_bins, kx, ke = len(n_tgt), len(node_tgt), len(edge_tgt)
    n_hist = np.zeros(n_bins, np.float64)
    node_hist = np.zeros(kx, np.float64)
    edge_hist = np.zeros(ke, np.float64)
    B, N = atom.shape
    for b in range(B):
        valid = atom[b] >= 0
        n_hist[int(valid.sum())] += 1
        for a in atom[b][valid]:
            node_hist[int(a)] += 1
        for i in range(N):
            for j in range(i + 1, N):
                if valid[i] and valid[j]:
                    edge_hist[int(edge[b, i, j])] += 1
    n_dist = n_hist / max(n_hist.sum(), 1.0)
    node_dist = node_hist / max(node_hist.sum(), 1.0)
    edge_dist = edge_hist / max(edge_hist.sum(), 1.0)
    mae = lambda p, t: float(np.abs(p - t).mean())
    return (n_dist, node_dist, edge_dist,
            mae(n_dist, n_tgt), mae(node_dist, node_tgt), mae(edge_dist, edge_tgt))


if __name__ == "__main__":
    import numpy as np

    # Small synthetic "dataset_infos": max_n_nodes = 12, 4 atom types, 5 edge types.
    B, MAX_N, KX, KE = 10, 12, 4, 5
    key = jax.random.PRNGKey(0)
    k1, k2, k3, k4, k5, k6 = jax.random.split(key, 6)

    n_nodes = jax.random.randint(k1, (B,), 3, MAX_N + 1)
    atom_types = jax.random.randint(k2, (B, MAX_N), 0, KX)
    raw_edges = jax.random.randint(k3, (B, MAX_N, MAX_N), 0, KE)
    upper = jnp.triu(raw_edges, 1)
    edge_types = (upper + jnp.transpose(upper, (0, 2, 1))).astype(jnp.int8)  # symmetric, int8 codes

    node_mask = jnp.arange(MAX_N)[None, :] < n_nodes[:, None]   # contiguous-tail padding
    atom_types = jnp.where(node_mask, atom_types, -1).astype(jnp.int32)

    # Target histograms (built in __init__ from dataset_infos), each sums to 1.
    n_target = jax.random.uniform(k4, (MAX_N + 1,)) + 0.1
    n_target = n_target / n_target.sum()
    node_target = jax.random.uniform(k5, (KX,)) + 0.1
    node_target = node_target / node_target.sum()
    edge_target = jax.random.uniform(k6, (KE,)) + 0.1
    edge_target = edge_target / edge_target.sum()

    ref = _reference_metrics(atom_types, edge_types, n_target, node_target, edge_target)

    # tile_rows=8 forces a 2-step grid with a ragged last block (exercises the
    # in-kernel tail masking); the default picks a single large tile.
    for tr in (8, None):
        outs = jax.block_until_ready(
            sampling_molecular_metrics(atom_types, edge_types,
                                       n_target, node_target, edge_target,
                                       tile_rows=tr))
        for got, want in zip(outs, ref):
            np.testing.assert_allclose(np.asarray(got).reshape(-1),
                                       np.asarray(want, np.float64).reshape(-1),
                                       rtol=1e-5, atol=1e-6)

    # TODO(synk): rdkit validity/uniqueness metrics (compute_molecular_metrics),
    # wandb logging and smiles/text-file writes in forward() have no Pallas equivalent.
    print("KERNEL_OK")
</pallas_src>

<mosaic_0001>
module attributes {stable_mosaic.version = 11 : i64} {
  func.func @_metrics_kernel(%arg0: i32, %arg1: memref<1xi32, #tpu.memory_space<smem>>, %arg2: memref<8x12xi32, #tpu.memory_space<vmem>>, %arg3: memref<8x1x12xi32, #tpu.memory_space<vmem>>, %arg4: memref<8x12x12xi8, #tpu.memory_space<vmem>>, %arg5: memref<1x13xf32, #tpu.memory_space<vmem>>, %arg6: memref<1x4xf32, #tpu.memory_space<vmem>>, %arg7: memref<1x5xf32, #tpu.memory_space<vmem>>, %arg8: memref<1x13xf32, #tpu.memory_space<vmem>>, %arg9: memref<1x4xf32, #tpu.memory_space<vmem>>, %arg10: memref<1x5xf32, #tpu.memory_space<vmem>>, %arg11: memref<1x1xf32, #tpu.memory_space<vmem>>, %arg12: memref<1x1xf32, #tpu.memory_space<vmem>>, %arg13: memref<1x1xf32, #tpu.memory_space<vmem>>, %arg14: memref<1x13xi32, #tpu.memory_space<vmem>>, %arg15: memref<1x4xi32, #tpu.memory_space<vmem>>, %arg16: memref<1x5xi32, #tpu.memory_space<vmem>>, %arg17: memref<1x12x12xi32, #tpu.memory_space<vmem>>) attributes {dimension_semantics = [#tpu.dimension_semantics<arbitrary>], iteration_bounds = array<i64: 2>, scalar_prefetch = 1 : i64, scratch_operands = 4 : i64, tpu.core_type = #tpu.core_type<tc>, window_params = [{transform_indices = @transform_0, window_bounds = array<i64: 8, 12>}, {transform_indices = @transform_1, window_bounds = array<i64: 8, 1, 12>}, {transform_indices = @transform_2, window_bounds = array<i64: 8, 12, 12>}, {pipeline_mode = #tpu.pipeline_mode<synchronous>, transform_indices = @transform_3, window_bounds = array<i64: 1, 13>}, {pipeline_mode = #tpu.pipeline_mode<synchronous>, transform_indices = @transform_4, window_bounds = array<i64: 1, 4>}, {pipeline_mode = #tpu.pipeline_mode<synchronous>, transform_indices = @transform_5, window_bounds = array<i64: 1, 5>}, {pipeline_mode = #tpu.pipeline_mode<synchronous>, transform_indices = @transform_6, window_bounds = array<i64: 1, 13>}, {pipeline_mode = #tpu.pipeline_mode<synchronous>, transform_indices = @transform_7, window_bounds = array<i64: 1, 4>}, {pipeline_mode = #tpu.pipeline_mode<synchronous>, transform_indices = @transform_8, window_bounds = array<i64: 1, 5>}, {pipeline_mode = #tpu.pipeline_mode<synchronous>, transform_indices = @transform_9, window_bounds = array<i64: 1, 1>}, {pipeline_mode = #tpu.pipeline_mode<synchronous>, transform_indices = @transform_10, window_bounds = array<i64: 1, 1>}, {pipeline_mode = #tpu.pipeline_mode<synchronous>, transform_indices = @transform_11, window_bounds = array<i64: 1, 1>}]} {
    %c0_i32 = arith.constant 0 : i32
    %0 = arith.cmpi eq, %arg0, %c0_i32 : i32
    %1 = arith.extui %0 : i1 to i32
    %c0_i32_0 = arith.constant 0 : i32
    %2 = arith.cmpi ne, %1, %c0_i32_0 : i32
    scf.if %2 {
      %c0_i32_67 = arith.constant 0 : i32
      %182 = vector.broadcast %c0_i32_67 : i32 to vector<1x13xi32>
      %c0_68 = arith.constant 0 : index
      %c0_69 = arith.constant 0 : index
      %183 = vector.load %arg14[%c0_68, %c0_69] : memref<1x13xi32, #tpu.memory_space<vmem>>, vector<1x13xi32>
      tpu.vector_store %arg14[%c0_68, %c0_69], %182 {strides = array<i32>} : memref<1x13xi32, #tpu.memory_space<vmem>>, vector<1x13xi32>,
      %c0_i32_70 = arith.constant 0 : i32
      %184 = vector.broadcast %c0_i32_70 : i32 to vector<1x4xi32>
      %c0_71 = arith.constant 0 : index
      %c0_72 = arith.constant 0 : index
      %185 = vector.load %arg15[%c0_71, %c0_72] : memref<1x4xi32, #tpu.memory_space<vmem>>, vector<1x4xi32>
      tpu.vector_store %arg15[%c0_71, %c0_72], %184 {strides = array<i32>} : memref<1x4xi32, #tpu.memory_space<vmem>>, vector<1x4xi32>,
      %c0_i32_73 = arith.constant 0 : i32
      %186 = vector.broadcast %c0_i32_73 : i32 to vector<1x5xi32>
      %c0_74 = arith.constant 0 : index
      %c0_75 = arith.constant 0 : index
      %187 = vector.load %arg16[%c0_74, %c0_75] : memref<1x5xi32, #tpu.memory_space<vmem>>, vector<1x5xi32>
      tpu.vector_store %arg16[%c0_74, %c0_75], %186 {strides = array<i32>} : memref<1x5xi32, #tpu.memory_space<vmem>>, vector<1x5xi32>,
      %188 = tpu.iota {dimensions = array<i32: 1>} : vector<1x12x12xi32>
      %189 = tpu.iota {dimensions = array<i32: 2>} : vector<1x12x12xi32>
      %190 = arith.cmpi sgt, %189, %188 : vector<1x12x12xi32>
      %191 = arith.extui %190 : vector<1x12x12xi1> to vector<1x12x12xi32>
      %c0_76 = arith.constant 0 : index
      %c0_77 = arith.constant 0 : index
      %c0_78 = arith.constant 0 : index
      %192 = vector.load %arg17[%c0_76, %c0_77, %c0_78] : memref<1x12x12xi32, #tpu.memory_space<vmem>>, vector<1x12x12xi32>
      tpu.vector_store %arg17[%c0_76, %c0_77, %c0_78], %191 {strides = array<i32>} : memref<1x12x12xi32, #tpu.memory_space<vmem>>, vector<1x12x12xi32>,
    } else {
    }
    %c0 = arith.constant 0 : index
    %c0_1 = arith.constant 0 : index
    %3 = vector.load %arg2[%c0, %c0_1] : memref<8x12xi32, #tpu.memory_space<vmem>>, vector<8x12xi32>
    %c0_2 = arith.constant 0 : index
    %c0_3 = arith.constant 0 : index
    %c0_4 = arith.constant 0 : index
    %4 = vector.load %arg3[%c0_2, %c0_3, %c0_4] : memref<8x1x12xi32, #tpu.memory_space<vmem>>, vector<8x1x12xi32>
    %c0_5 = arith.constant 0 : index
    %c0_6 = arith.constant 0 : index
    %c0_7 = arith.constant 0 : index
    %5 = vector.load %arg4[%c0_5, %c0_6, %c0_7] : memref<8x12x12xi8, #tpu.memory_space<vmem>>, vector<8x12x12xi8>
    %6 = arith.extsi %5 : vector<8x12x12xi8> to vector<8x12x12xi32>
    %c8_i32 = arith.constant 8 : i32
    %7 = arith.muli %arg0, %c8_i32 : i32
    %8 = tpu.iota {dimensions = array<i32: 0>} : vector<8x1xi32>
    %9 = vector.broadcast %7 : i32 to vector<8x1xi32>
    %10 = arith.addi %9, %8 : vector<8x1xi32>
    %c0_8 = arith.constant 0 : index
    %11 = memref.load %arg1[%c0_8] : memref<1xi32, #tpu.memory_space<smem>>
    %12 = vector.broadcast %11 : i32 to vector<8x1xi32>
    %13 = arith.cmpi slt, %10, %12 : vector<8x1xi32>
    %c-1_i32 = arith.constant -1 : i32
    %14 = vector.shape_cast %13 : vector<8x1xi1> to vector<8x1xi1>
    %15 = vector.broadcast %14 : vector<8x1xi1> to vector<8x12xi1>
    %16 = vector.broadcast %c-1_i32 : i32 to vector<8x12xi32>
    %17 = arith.select %15, %3, %16 : vector<8x12xi1>, vector<8x12xi32>
    %c0_i32_9 = arith.constant 0 : i32
    %18 = vector.broadcast %c0_i32_9 : i32 to vector<8x12xi32>
    %19 = arith.cmpi sge, %17, %18 : vector<8x12xi32>
    %20 = arith.extui %19 : vector<8x12xi1> to vector<8x12xi32>
    %cst = arith.constant dense<0> : vector<8xi32>
    %21 = vector.multi_reduction <add>, %20, %cst [1] : vector<8x12xi32> to vector<8xi32>
    %22 = vector.shape_cast %21 : vector<8xi32> to vector<8x1xi32>
    %23 = tpu.iota {dimensions = array<i32: 1>} : vector<8x13xi32>
    %24 = vector.broadcast %22 : vector<8x1xi32> to vector<8x13xi32>
    %25 = arith.cmpi eq, %24, %23 : vector<8x13xi32>
    %26 = vector.broadcast %13 : vector<8x1xi1> to vector<8x13xi1>
    %27 = arith.andi %25, %26 : vector<8x13xi1>
    %28 = arith.extui %27 : vector<8x13xi1> to vector<8x13xi32>
    %c0_10 = arith.constant 0 : index
    %c0_11 = arith.constant 0 : index
    %29 = vector.load %arg14[%c0_10, %c0_11] : memref<1x13xi32, #tpu.memory_space<vmem>>, vector<1x13xi32>
    %cst_12 = arith.constant dense<0> : vector<13xi32>
    %30 = vector.multi_reduction <add>, %28, %cst_12 [0] : vector<8x13xi32> to vector<13xi32>
    %31 = vector.shape_cast %30 : vector<13xi32> to vector<1x13xi32>
    %32 = arith.addi %29, %31 : vector<1x13xi32>
    %c0_13 = arith.constant 0 : index
    %c0_14 = arith.constant 0 : index
    %33 = vector.load %arg14[%c0_13, %c0_14] : memref<1x13xi32, #tpu.memory_space<vmem>>, vector<1x13xi32>
    tpu.vector_store %arg14[%c0_13, %c0_14], %32 {strides = array<i32>} : memref<1x13xi32, #tpu.memory_space<vmem>>, vector<1x13xi32>,
    %34 = tpu.iota {dimensions = array<i32: 1>} : vector<1x4xi32>
    %c0_i32_15 = arith.constant 0 : i32
    %35 = vector.broadcast %c0_i32_15 : i32 to vector<1x4xi32>
    %c0_i32_16 = arith.constant 0 : i32
    %36 = vector.broadcast %c0_i32_16 : i32 to vector<8x12xi32>
    %37 = arith.cmpi eq, %17, %36 : vector<8x12xi32>
    %38 = arith.extui %37 : vector<8x12xi1> to vector<8x12xi32>
    %39 = vector.shape_cast %38 : vector<8x12xi32> to vector<1x8x12xi32>
    %cst_17 = arith.constant dense<0> : vector<1xi32>
    %40 = vector.multi_reduction <add>, %39, %cst_17 [1, 2] : vector<1x8x12xi32> to vector<1xi32>
    %41 = vector.shape_cast %40 : vector<1xi32> to vector<1x1x1xi32>
    %42 = vector.extract %41[0, 0, 0] : i32 from vector<1x1x1xi32>
    %c0_i32_18 = arith.constant 0 : i32
    %43 = vector.broadcast %c0_i32_18 : i32 to vector<1x4xi32>
    %44 = arith.cmpi eq, %34, %43 : vector<1x4xi32>
    %c0_i32_19 = arith.constant 0 : i32
    %45 = vector.broadcast %42 : i32 to vector<1x4xi32>
    %46 = vector.broadcast %c0_i32_19 : i32 to vector<1x4xi32>
    %47 = arith.select %44, %45, %46 : vector<1x4xi1>, vector<1x4xi32>
    %48 = arith.addi %35, %47 : vector<1x4xi32>
    %c1_i32 = arith.constant 1 : i32
    %49 = vector.broadcast %c1_i32 : i32 to vector<8x12xi32>
    %50 = arith.cmpi eq, %17, %49 : vector<8x12xi32>
    %51 = arith.extui %50 : vector<8x12xi1> to vector<8x12xi32>
    %52 = vector.shape_cast %51 : vector<8x12xi32> to vector<1x8x12xi32>
    %cst_20 = arith.constant dense<0> : vector<1xi32>
    %53 = vector.multi_reduction <add>, %52, %cst_20 [1, 2] : vector<1x8x12xi32> to vector<1xi32>
    %54 = vector.shape_cast %53 : vector<1xi32> to vector<1x1x1xi32>
    %55 = vector.extract %54[0, 0, 0] : i32 from vector<1x1x1xi32>
    %c1_i32_21 = arith.constant 1 : i32
    %56 = vector.broadcast %c1_i32_21 : i32 to vector<1x4xi32>
    %57 = arith.cmpi eq, %34, %56 : vector<1x4xi32>
    %c0_i32_22 = arith.constant 0 : i32
    %58 = vector.broadcast %55 : i32 to vector<1x4xi32>
    %59 = vector.broadcast %c0_i32_22 : i32 to vector<1x4xi32>
    %60 = arith.select %57, %58, %59 : vector<1x4xi1>, vector<1x4xi32>
    %61 = arith.addi %48, %60 : vector<1x4xi32>
    %c2_i32 = arith.constant 2 : i32
    %62 = vector.broadcast %c2_i32 : i32 to vector<8x12xi32>
    %63 = arith.cmpi eq, %17, %62 : vector<8x12xi32>
    %64 = arith.extui %63 : vector<8x12xi1> to vector<8x12xi32>
    %65 = vector.shape_cast %64 : vector<8x12xi32> to vector<1x8x12xi32>
    %cst_23 = arith.constant dense<0> : vector<1xi32>
    %66 = vector.multi_reduction <add>, %65, %cst_23 [1, 2] : vector<1x8x12xi32> to vector<1xi32>
    %67 = vector.shape_cast %66 : vector<1xi32> to vector<1x1x1xi32>
    %68 = vector.extract %67[0, 0, 0] : i32 from vector<1x1x1xi32>
    %c2_i32_24 = arith.constant 2 : i32
    %69 = vector.broadcast %c2_i32_24 : i32 to vector<1x4xi32>
    %70 = arith.cmpi eq, %34, %69 : vector<1x4xi32>
    %c0_i32_25 = arith.constant 0 : i32
    %71 = vector.broadcast %68 : i32 to vector<1x4xi32>
    %72 = vector.broadcast %c0_i32_25 : i32 to vector<1x4xi32>
    %73 = arith.select %70, %71, %72 : vector<1x4xi1>, vector<1x4xi32>
    %74 = arith.addi %61, %73 : vector<1x4xi32>
    %c3_i32 = arith.constant 3 : i32
    %75 = vector.broadcast %c3_i32 : i32 to vector<8x12xi32>
    %76 = arith.cmpi eq, %17, %75 : vector<8x12xi32>
    %77 = arith.extui %76 : vector<8x12xi1> to vector<8x12xi32>
    %78 = vector.shape_cast %77 : vector<8x12xi32> to vector<1x8x12xi32>
    %cst_26 = arith.constant dense<0> : vector<1xi32>
    %79 = vector.multi_reduction <add>, %78, %cst_26 [1, 2] : vector<1x8x12xi32> to vector<1xi32>
    %80 = vector.shape_cast %79 : vector<1xi32> to vector<1x1x1xi32>
    %81 = vector.extract %80[0, 0, 0] : i32 from vector<1x1x1xi32>
    %c3_i32_27 = arith.constant 3 : i32
    %82 = vector.broadcast %c3_i32_27 : i32 to vector<1x4xi32>
    %83 = arith.cmpi eq, %34, %82 : vector<1x4xi32>
    %c0_i32_28 = arith.constant 0 : i32
    %84 = vector.broadcast %81 : i32 to vector<1x4xi32>
    %85 = vector.broadcast %c0_i32_28 : i32 to vector<1x4xi32>
    %86 = arith.select %83, %84, %85 : vector<1x4xi1>, vector<1x4xi32>
    %87 = arith.addi %74, %86 : vector<1x4xi32>
    %c0_29 = arith.constant 0 : index
    %c0_30 = arith.constant 0 : index
    %88 = vector.load %arg15[%c0_29, %c0_30] : memref<1x4xi32, #tpu.memory_space<vmem>>, vector<1x4xi32>
    %89 = arith.addi %88, %87 : vector<1x4xi32>
    %c0_31 = arith.constant 0 : index
    %c0_32 = arith.constant 0 : index
    %90 = vector.load %arg15[%c0_31, %c0_32] : memref<1x4xi32, #tpu.memory_space<vmem>>, vector<1x4xi32>
    tpu.vector_store %arg15[%c0_31, %c0_32], %89 {strides = array<i32>} : memref<1x4xi32, #tpu.memory_space<vmem>>, vector<1x4xi32>,
    %c8_i32_33 = arith.constant 8 : i32
    %91 = arith.muli %arg0, %c8_i32_33 : i32
    %92 = tpu.iota {dimensions = array<i32: 0>} : vector<8x1x12xi32>
    %93 = vector.broadcast %91 : i32 to vector<8x1x12xi32>
    %94 = arith.addi %93, %92 : vector<8x1x12xi32>
    %c0_i32_34 = arith.constant 0 : i32
    %95 = vector.broadcast %c0_i32_34 : i32 to vector<8x1x12xi32>
    %96 = arith.cmpi sge, %4, %95 : vector<8x1x12xi32>
    %c0_35 = arith.constant 0 : index
    %97 = memref.load %arg1[%c0_35] : memref<1xi32, #tpu.memory_space<smem>>
    %98 = vector.broadcast %97 : i32 to vector<8x1x12xi32>
    %99 = arith.cmpi slt, %94, %98 : vector<8x1x12xi32>
    %100 = arith.andi %96, %99 : vector<8x1x12xi1>
    %c0_36 = arith.constant 0 : index
    %c0_37 = arith.constant 0 : index
    %c0_38 = arith.constant 0 : index
    %101 = vector.load %arg17[%c0_36, %c0_37, %c0_38] : memref<1x12x12xi32, #tpu.memory_space<vmem>>, vector<1x12x12xi32>
    %c0_i32_39 = arith.constant 0 : i32
    %102 = vector.broadcast %c0_i32_39 : i32 to vector<1x12x12xi32>
    %103 = arith.cmpi sgt, %101, %102 : vector<1x12x12xi32>
    %104 = vector.broadcast %100 : vector<8x1x12xi1> to vector<8x12x12xi1>
    %105 = vector.broadcast %103 : vector<1x12x12xi1> to vector<8x12x12xi1>
    %106 = arith.andi %104, %105 : vector<8x12x12xi1>
    %c-1_i32_40 = arith.constant -1 : i32
    %107 = vector.broadcast %c-1_i32_40 : i32 to vector<8x12x12xi32>
    %108 = arith.select %106, %6, %107 : vector<8x12x12xi1>, vector<8x12x12xi32>
    %109 = tpu.iota {dimensions = array<i32: 1>} : vector<1x5xi32>
    %c0_i32_41 = arith.constant 0 : i32
    %110 = vector.broadcast %c0_i32_41 : i32 to vector<1x5xi32>
    %c0_i32_42 = arith.constant 0 : i32
    %111 = vector.broadcast %c0_i32_42 : i32 to vector<8x12x12xi32>
    %112 = arith.cmpi eq, %108, %111 : vector<8x12x12xi32>
    %113 = arith.extui %112 : vector<8x12x12xi1> to vector<8x12x12xi32>
    %114 = vector.shape_cast %113 : vector<8x12x12xi32> to vector<1x8x12x12xi32>
    %cst_43 = arith.constant dense<0> : vector<1xi32>
    %115 = vector.multi_reduction <add>, %114, %cst_43 [1, 2, 3] : vector<1x8x12x12xi32> to vector<1xi32>
    %116 = vector.shape_cast %115 : vector<1xi32> to vector<1x1x1x1xi32>
    %117 = vector.extract %116[0, 0, 0, 0] : i32 from vector<1x1x1x1xi32>
    %c0_i32_44 = arith.constant 0 : i32
    %118 = vector.broadcast %c0_i32_44 : i32 to vector<1x5xi32>
    %119 = arith.cmpi eq, %109, %118 : vector<1x5xi32>
    %c0_i32_45 = arith.constant 0 : i32
    %120 = vector.broadcast %117 : i32 to vector<1x5xi32>
    %121 = vector.broadcast %c0_i32_45 : i32 to vector<1x5xi32>
    %122 = arith.select %119, %120, %121 : vector<1x5xi1>, vector<1x5xi32>
    %123 = arith.addi %110, %122 : vector<1x5xi32>
    %c1_i32_46 = arith.constant 1 : i32
    %124 = vector.broadcast %c1_i32_46 : i32 to vector<8x12x12xi32>
    %125 = arith.cmpi eq, %108, %124 : vector<8x12x12xi32>
    %126 = arith.extui %125 : vector<8x12x12xi1> to vector<8x12x12xi32>
    %127 = vector.shape_cast %126 : vector<8x12x12xi32> to vector<1x8x12x12xi32>
    %cst_47 = arith.constant dense<0> : vector<1xi32>
    %128 = vector.multi_reduction <add>, %127, %cst_47 [1, 2, 3] : vector<1x8x12x12xi32> to vector<1xi32>
    %129 = vector.shape_cast %128 : vector<1xi32> to vector<1x1x1x1xi32>
    %130 = vector.extract %129[0, 0, 0, 0] : i32 from vector<1x1x1x1xi32>
    %c1_i32_48 = arith.constant 1 : i32
    %131 = vector.broadcast %c1_i32_48 : i32 to vector<1x5xi32>
    %132 = arith.cmpi eq, %109, %131 : vector<1x5xi32>
    %c0_i32_49 = arith.constant 0 : i32
    %133 = vector.broadcast %130 : i32 to vector<1x5xi32>
    %134 = vector.broadcast %c0_i32_49 : i32 to vector<1x5xi32>
    %135 = arith.select %132, %133, %134 : vector<1x5xi1>, vector<1x5xi32>
    %136 = arith.addi %123, %135 : vector<1x5xi32>
    %c2_i32_50 = arith.constant 2 : i32
    %137 = vector.broadcast %c2_i32_50 : i32 to vector<8x12x12xi32>
    %138 = arith.cmpi eq, %108, %137 : vector<8x12x12xi32>
    %139 = arith.extui %138 : vector<8x12x12xi1> to vector<8x12x12xi32>
    %140 = vector.shape_cast %139 : vector<8x12x12xi32> to vector<1x8x12x12xi32>
    %cst_51 = arith.constant dense<0> : vector<1xi32>
    %141 = vector.multi_reduction <add>, %140, %cst_51 [1, 2, 3] : vector<1x8x12x12xi32> to vector<1xi32>
    %142 = vector.shape_cast %141 : vector<1xi32> to vector<1x1x1x1xi32>
    %143 = vector.extract %142[0, 0, 0, 0] : i32 from vector<1x1x1x1xi32>
    %c2_i32_52 = arith.constant 2 : i32
    %144 = vector.broadcast %c2_i32_52 : i32 to vector<1x5xi32>
    %145 = arith.cmpi eq, %109, %144 : vector<1x5xi32>
    %c0_i32_53 = arith.constant 0 : i32
    %146 = vector.broadcast %143 : i32 to vector<1x5xi32>
    %147 = vector.broadcast %c0_i32_53 : i32 to vector<1x5xi32>
    %148 = arith.select %145, %146, %147 : vector<1x5xi1>, vector<1x5xi32>
    %149 = arith.addi %136, %148 : vector<1x5xi32>
    %c3_i32_54 = arith.constant 3 : i32
    %150 = vector.broadcast %c3_i32_54 : i32 to vector<8x12x12xi32>
    %151 = arith.cmpi eq, %108, %150 : vector<8x12x12xi32>
    %152 = arith.extui %151 : vector<8x12x12xi1> to vector<8x12x12xi32>
    %153 = vector.shape_cast %152 : vector<8x12x12xi32> to vector<1x8x12x12xi32>
    %cst_55 = arith.constant dense<0> : vector<1xi32>
    %154 = vector.multi_reduction <add>, %153, %cst_55 [1, 2, 3] : vector<1x8x12x12xi32> to vector<1xi32>
    %155 = vector.shape_cast %154 : vector<1xi32> to vector<1x1x1x1xi32>
    %156 = vector.extract %155[0, 0, 0, 0] : i32 from vector<1x1x1x1xi32>
    %c3_i32_56 = arith.constant 3 : i32
    %157 = vector.broadcast %c3_i32_56 : i32 to vector<1x5xi32>
    %158 = arith.cmpi eq, %109, %157 : vector<1x5xi32>
    %c0_i32_57 = arith.constant 0 : i32
    %159 = vector.broadcast %156 : i32 to vector<1x5xi32>
    %160 = vector.broadcast %c0_i32_57 : i32 to vector<1x5xi32>
    %161 = arith.select %158, %159, %160 : vector<1x5xi1>, vector<1x5xi32>
    %162 = arith.addi %149, %161 : vector<1x5xi32>
    %c4_i32 = arith.constant 4 : i32
    %163 = vector.broadcast %c4_i32 : i32 to vector<8x12x12xi32>
    %164 = arith.cmpi eq, %108, %163 : vector<8x12x12xi32>
    %165 = arith.extui %164 : vector<8x12x12xi1> to vector<8x12x12xi32>
    %166 = vector.shape_cast %165 : vector<8x12x12xi32> to vector<1x8x12x12xi32>
    %cst_58 = arith.constant dense<0> : vector<1xi32>
    %167 = vector.multi_reduction <add>, %166, %cst_58 [1, 2, 3] : vector<1x8x12x12xi32> to vector<1xi32>
    %168 = vector.shape_cast %167 : vector<1xi32> to vector<1x1x1x1xi32>
    %169 = vector.extract %168[0, 0, 0, 0] : i32 from vector<1x1x1x1xi32>
    %c4_i32_59 = arith.constant 4 : i32
    %170 = vector.broadcast %c4_i32_59 : i32 to vector<1x5xi32>
    %171 = arith.cmpi eq, %109, %170 : vector<1x5xi32>
    %c0_i32_60 = arith.constant 0 : i32
    %172 = vector.broadcast %169 : i32 to vector<1x5xi32>
    %173 = vector.broadcast %c0_i32_60 : i32 to vector<1x5xi32>
    %174 = arith.select %171, %172, %173 : vector<1x5xi1>, vector<1x5xi32>
    %175 = arith.addi %162, %174 : vector<1x5xi32>
    %c0_61 = arith.constant 0 : index
    %c0_62 = arith.constant 0 : index
    %176 = vector.load %arg16[%c0_61, %c0_62] : memref<1x5xi32, #tpu.memory_space<vmem>>, vector<1x5xi32>
    %177 = arith.addi %176, %175 : vector<1x5xi32>
    %c0_63 = arith.constant 0 : index
    %c0_64 = arith.constant 0 : index
    %178 = vector.load %arg16[%c0_63, %c0_64] : memref<1x5xi32, #tpu.memory_space<vmem>>, vector<1x5xi32>
    tpu.vector_store %arg16[%c0_63, %c0_64], %177 {strides = array<i32>} : memref<1x5xi32, #tpu.memory_space<vmem>>, vector<1x5xi32>,
    %c1_i32_65 = arith.constant 1 : i32
    %179 = arith.cmpi eq, %arg0, %c1_i32_65 : i32
    %180 = arith.extui %179 : i1 to i32
    %c0_i32_66 = arith.constant 0 : i32
    %181 = arith.cmpi ne, %180, %c0_i32_66 : i32
    scf.if %181 {
      %c0_67 = arith.constant 0 : index
      %c0_68 = arith.constant 0 : index
      %182 = vector.load %arg14[%c0_67, %c0_68] : memref<1x13xi32, #tpu.memory_space<vmem>>, vector<1x13xi32>
      %183 = arith.sitofp %182 : vector<1x13xi32> to vector<1x13xf32>
      %184 = vector.shape_cast %183 : vector<1x13xf32> to vector<1x1x13xf32>
      %cst_69 = arith.constant dense<0.000000e+00> : vector<1xf32>
      %185 = vector.multi_reduction <add>, %184, %cst_69 [1, 2] : vector<1x1x13xf32> to vector<1xf32>
      %186 = vector.shape_cast %185 : vector<1xf32> to vector<1x1x1xf32>
      %187 = vector.extract %186[0, 0, 0] : f32 from vector<1x1x1xf32>
      %cst_70 = arith.constant 1.000000e+00 : f32
      %188 = arith.maximumf %187, %cst_70 : f32
      %189 = vector.broadcast %188 : f32 to vector<1x13xf32>
      %190 = arith.divf %183, %189 : vector<1x13xf32>
      %c0_71 = arith.constant 0 : index
      %c0_72 = arith.constant 0 : index
      %191 = vector.load %arg15[%c0_71, %c0_72] : memref<1x4xi32, #tpu.memory_space<vmem>>, vector<1x4xi32>
      %192 = arith.sitofp %191 : vector<1x4xi32> to vector<1x4xf32>
      %193 = vector.shape_cast %192 : vector<1x4xf32> to vector<1x1x4xf32>
      %cst_73 = arith.constant dense<0.000000e+00> : vector<1xf32>
      %194 = vector.multi_reduction <add>, %193, %cst_73 [1, 2] : vector<1x1x4xf32> to vector<1xf32>
      %195 = vector.shape_cast %194 : vector<1xf32> to vector<1x1x1xf32>
      %196 = vector.extract %195[0, 0, 0] : f32 from vector<1x1x1xf32>
      %cst_74 = arith.constant 1.000000e+00 : f32
      %197 = arith.maximumf %196, %cst_74 : f32
      %198 = vector.broadcast %197 : f32 to vector<1x4xf32>
      %199 = arith.divf %192, %198 : vector<1x4xf32>
      %c0_75 = arith.constant 0 : index
      %c0_76 = arith.constant 0 : index
      %200 = vector.load %arg16[%c0_75, %c0_76] : memref<1x5xi32, #tpu.memory_space<vmem>>, vector<1x5xi32>
      %201 = arith.sitofp %200 : vector<1x5xi32> to vector<1x5xf32>
      %202 = vector.shape_cast %201 : vector<1x5xf32> to vector<1x1x5xf32>
      %cst_77 = arith.constant dense<0.000000e+00> : vector<1xf32>
      %203 = vector.multi_reduction <add>, %202, %cst_77 [1, 2] : vector<1x1x5xf32> to vector<1xf32>
      %204 = vector.shape_cast %203 : vector<1xf32> to vector<1x1x1xf32>
      %205 = vector.extract %204[0, 0, 0] : f32 from vector<1x1x1xf32>
      %cst_78 = arith.constant 1.000000e+00 : f32
      %206 = arith.maximumf %205, %cst_78 : f32
      %207 = vector.broadcast %206 : f32 to vector<1x5xf32>
      %208 = arith.divf %201, %207 : vector<1x5xf32>
      %c0_79 = arith.constant 0 : index
      %c0_80 = arith.constant 0 : index
      %209 = vector.load %arg8[%c0_79, %c0_80] : memref<1x13xf32, #tpu.memory_space<vmem>>, vector<1x13xf32>
      tpu.vector_store %arg8[%c0_79, %c0_80], %190 {strides = array<i32>} : memref<1x13xf32, #tpu.memory_space<vmem>>, vector<1x13xf32>,
      %c0_81 = arith.constant 0 : index
      %c0_82 = arith.constant 0 : index
      %210 = vector.load %arg9[%c0_81, %c0_82] : memref<1x4xf32, #tpu.memory_space<vmem>>, vector<1x4xf32>
      tpu.vector_store %arg9[%c0_81, %c0_82], %199 {strides = array<i32>} : memref<1x4xf32, #tpu.memory_space<vmem>>, vector<1x4xf32>,
      %c0_83 = arith.constant 0 : index
      %c0_84 = arith.constant 0 : index
      %211 = vector.load %arg10[%c0_83, %c0_84] : memref<1x5xf32, #tpu.memory_space<vmem>>, vector<1x5xf32>
      tpu.vector_store %arg10[%c0_83, %c0_84], %208 {strides = array<i32>} : memref<1x5xf32, #tpu.memory_space<vmem>>, vector<1x5xf32>,
      %c0_85 = arith.constant 0 : index
      %c0_86 = arith.constant 0 : index
      %212 = vector.load %arg5[%c0_85, %c0_86] : memref<1x13xf32, #tpu.memory_space<vmem>>, vector<1x13xf32>
      %213 = arith.subf %190, %212 : vector<1x13xf32>
      %214 = math.absf %213 : vector<1x13xf32>
      %215 = vector.shape_cast %214 : vector<1x13xf32> to vector<1x1x13xf32>
      %cst_87 = arith.constant dense<0.000000e+00> : vector<1xf32>
      %216 = vector.multi_reduction <add>, %215, %cst_87 [1, 2] : vector<1x1x13xf32> to vector<1xf32>
      %217 = vector.shape_cast %216 : vector<1xf32> to vector<1x1x1xf32>
      %218 = vector.extract %217[0, 0, 0] : f32 from vector<1x1x1xf32>
      %219 = vector.broadcast %218 : f32 to vector<1x1xf32>
      %cst_88 = arith.constant 1.300000e+01 : f32
      %220 = vector.broadcast %cst_88 : f32 to vector<1x1xf32>
      %221 = arith.divf %219, %220 : vector<1x1xf32>
      %c0_89 = arith.constant 0 : index
      %c0_90 = arith.constant 0 : index
      %222 = vector.load %arg11[%c0_89, %c0_90] : memref<1x1xf32, #tpu.memory_space<vmem>>, vector<1x1xf32>
      tpu.vector_store %arg11[%c0_89, %c0_90], %221 {strides = array<i32>} : memref<1x1xf32, #tpu.memory_space<vmem>>, vector<1x1xf32>,
      %c0_91 = arith.constant 0 : index
      %c0_92 = arith.constant 0 : index
      %223 = vector.load %arg6[%c0_91, %c0_92] : memref<1x4xf32, #tpu.memory_space<vmem>>, vector<1x4xf32>
      %224 = arith.subf %199, %223 : vector<1x4xf32>
      %225 = math.absf %224 : vector<1x4xf32>
      %226 = vector.shape_cast %225 : vector<1x4xf32> to vector<1x1x4xf32>
      %cst_93 = arith.constant dense<0.000000e+00> : vector<1xf32>
      %227 = vector.multi_reduction <add>, %226, %cst_93 [1, 2] : vector<1x1x4xf32> to vector<1xf32>
      %228 = vector.shape_cast %227 : vector<1xf32> to vector<1x1x1xf32>
      %229 = vector.extract %228[0, 0, 0] : f32 from vector<1x1x1xf32>
      %230 = vector.broadcast %229 : f32 to vector<1x1xf32>
      %cst_94 = arith.constant 4.000000e+00 : f32
      %231 = vector.broadcast %cst_94 : f32 to vector<1x1xf32>
      %232 = arith.divf %230, %231 : vector<1x1xf32>
      %c0_95 = arith.constant 0 : index
      %c0_96 = arith.constant 0 : index
      %233 = vector.load %arg12[%c0_95, %c0_96] : memref<1x1xf32, #tpu.memory_space<vmem>>, vector<1x1xf32>
      tpu.vector_store %arg12[%c0_95, %c0_96], %232 {strides = array<i32>} : memref<1x1xf32, #tpu.memory_space<vmem>>, vector<1x1xf32>,
      %c0_97 = arith.constant 0 : index
      %c0_98 = arith.constant 0 : index
      %234 = vector.load %arg7[%c0_97, %c0_98] : memref<1x5xf32, #tpu.memory_space<vmem>>, vector<1x5xf32>
      %235 = arith.subf %208, %234 : vector<1x5xf32>
      %236 = math.absf %235 : vector<1x5xf32>
      %237 = vector.shape_cast %236 : vector<1x5xf32> to vector<1x1x5xf32>
      %cst_99 = arith.constant dense<0.000000e+00> : vector<1xf32>
      %238 = vector.multi_reduction <add>, %237, %cst_99 [1, 2] : vector<1x1x5xf32> to vector<1xf32>
      %239 = vector.shape_cast %238 : vector<1xf32> to vector<1x1x1xf32>
      %240 = vector.extract %239[0, 0, 0] : f32 from vector<1x1x1xf32>
      %241 = vector.broadcast %240 : f32 to vector<1x1xf32>
      %cst_100 = arith.constant 5.000000e+00 : f32
      %242 = vector.broadcast %cst_100 : f32 to vector<1x1xf32>
      %243 = arith.divf %241, %242 : vector<1x1xf32>
      %c0_101 = arith.constant 0 : index
      %c0_102 = arith.constant 0 : index
      %244 = vector.load %arg13[%c0_101, %c0_102] : memref<1x1xf32, #tpu.memory_space<vmem>>, vector<1x1xf32>
      tpu.vector_store %arg13[%c0_101, %c0_102], %243 {strides = array<i32>} : memref<1x1xf32, #tpu.memory_space<vmem>>, vector<1x1xf32>,
    } else {
    }
    return
  }
  func.func @transform_0(%arg0: i32, %arg1: memref<1xi32, #tpu.memory_space<smem>>) -> (i32, i32) {
    %c0_i32 = arith.constant 0 : i32
    %c0_i32_0 = arith.constant 0 : i32
    return %arg0, %c0_i32 : i32, i32
  }
  func.func @transform_1(%arg0: i32, %arg1: memref<1xi32, #tpu.memory_space<smem>>) -> (i32, i32, i32) {
    %c0_i32 = arith.constant 0 : i32
    %c0_i32_0 = arith.constant 0 : i32
    %c0_i32_1 = arith.constant 0 : i32
    return %arg0, %c0_i32, %c0_i32_0 : i32, i32, i32
  }
  func.func @transform_2(%arg0: i32, %arg1: memref<1xi32, #tpu.memory_space<smem>>) -> (i32, i32, i32) {
    %c0_i32 = arith.constant 0 : i32
    %c0_i32_0 = arith.constant 0 : i32
    %c0_i32_1 = arith.constant 0 : i32
    return %arg0, %c0_i32, %c0_i32_0 : i32, i32, i32
  }
  func.func @transform_3(%arg0: i32, %arg1: memref<1xi32, #tpu.memory_space<smem>>) -> (i32, i32) {
    %c0_i32 = arith.constant 0 : i32
    %c0_i32_0 = arith.constant 0 : i32
    %c0_i32_1 = arith.constant 0 : i32
    return %c0_i32, %c0_i32_0 : i32, i32
  }
  func.func @transform_4(%arg0: i32, %arg1: memref<1xi32, #tpu.memory_space<smem>>) -> (i32, i32) {
    %c0_i32 = arith.constant 0 : i32
    %c0_i32_0 = arith.constant 0 : i32
    %c0_i32_1 = arith.constant 0 : i32
    return %c0_i32, %c0_i32_0 : i32, i32
  }
  func.func @transform_5(%arg0: i32, %arg1: memref<1xi32, #tpu.memory_space<smem>>) -> (i32, i32) {
    %c0_i32 = arith.constant 0 : i32
    %c0_i32_0 = arith.constant 0 : i32
    %c0_i32_1 = arith.constant 0 : i32
    return %c0_i32, %c0_i32_0 : i32, i32
  }
  func.func @transform_6(%arg0: i32, %arg1: memref<1xi32, #tpu.memory_space<smem>>) -> (i32, i32) {
    %c0_i32 = arith.constant 0 : i32
    %c0_i32_0 = arith.constant 0 : i32
    %c0_i32_1 = arith.constant 0 : i32
    return %c0_i32, %c0_i32_0 : i32, i32
  }
  func.func @transform_7(%arg0: i32, %arg1: memref<1xi32, #tpu.memory_space<smem>>) -> (i32, i32) {
    %c0_i32 = arith.constant 0 : i32
    %c0_i32_0 = arith.constant 0 : i32
    %c0_i32_1 = arith.constant 0 : i32
    return %c0_i32, %c0_i32_0 : i32, i32
  }
  func.func @transform_8(%arg0: i32, %arg1: memref<1xi32, #tpu.memory_space<smem>>) -> (i32, i32) {
    %c0_i32 = arith.constant 0 : i32
    %c0_i32_0 = arith.constant 0 : i32
    %c0_i32_1 = arith.constant 0 : i32
    return %c0_i32, %c0_i32_0 : i32, i32
  }
  func.func @transform_9(%arg0: i32, %arg1: memref<1xi32, #tpu.memory_space<smem>>) -> (i32, i32) {
    %c0_i32 = arith.constant 0 : i32
    %c0_i32_0 = arith.constant 0 : i32
    %c0_i32_1 = arith.constant 0 : i32
    return %c0_i32, %c0_i32_0 : i32, i32
  }
  func.func @transform_10(%arg0: i32, %arg1: memref<1xi32, #tpu.memory_space<smem>>) -> (i32, i32) {
    %c0_i32 = arith.constant 0 : i32
    %c0_i32_0 = arith.constant 0 : i32
    %c0_i32_1 = arith.constant 0 : i32
    return %c0_i32, %c0_i32_0 : i32, i32
  }
  func.func @transform_11(%arg0: i32, %arg1: memref<1xi32, #tpu.memory_space<smem>>) -> (i32, i32) {
    %c0_i32 = arith.constant 0 : i32
    %c0_i32_0 = arith.constant 0 : i32
    %c0_i32_1 = arith.constant 0 : i32
    return %c0_i32, %c0_i32_0 : i32, i32
  }
}

</mosaic_0001>

<llo_original>
// kernel: tpu_custom_call.1
$region0: #{tpu_custom_call.1}
  #allocation0 [shape = 'u32[]', space=smem, size = 0x4, offset = 0x4, fixed_abs, tag = 'smem constant byte address 0x4 - core index']
  #allocation1 [shape = 'u32[144,128]{1,0:T(1,128)}', space=vmem, size = 0x12000, scoped, tag = 'internal scratch']
  #allocation2 [shape = 's32[1,13]{1,0:T(1,128)}', space=vmem, size = 0x200, scoped, tag = 'scratch operand']
  #allocation3 [shape = 's32[1,4]{1,0:T(1,128)}', space=vmem, size = 0x200, scoped, tag = 'scratch operand']
  #allocation4 [shape = 's32[1,5]{1,0:T(1,128)}', space=vmem, size = 0x200, scoped, tag = 'scratch operand']
  #allocation5 [shape = 's32[1,12,12]{2,1,0:T(8,128)}', space=vmem, size = 0x2000, scoped, tag = 'scratch operand']
  #allocation6 [shape = 's32[1]{0}', space=sflag, size = 0x4, scoped, tag = 'scoped memory for tpu_custom_call.1']
  #allocation7 [shape = 's32[1]{0:T(128)S(6)}', space=smem, size = 0x200, scoped, tag = 'prefetched SMEM operand 0']
  %s0 = inlined_call_operand.<no memory space> [shape: s32[1], index: 0, kind: input, shape index: {}]
  %s1 = inlined_call_operand.hbm [shape: s32[10,12], index: 1, kind: input, shape index: {}]
  %s2 = inlined_call_operand.hbm [shape: s32[10,1,12], index: 2, kind: input, shape index: {}]
  %s3 = inlined_call_operand.hbm [shape: s8[10,12,12], index: 3, kind: input, shape index: {}]
  %s4 = inlined_call_operand.vmem [shape: f32[1,13], index: 4, kind: input, shape index: {}]
  %s5 = inlined_call_operand.vmem [shape: f32[1,4], index: 5, kind: input, shape index: {}]
  %s6 = inlined_call_operand.vmem [shape: f32[1,5], index: 6, kind: input, shape index: {}]
  %s7 = inlined_call_operand.hbm [shape: f32[1,13], index: 7, kind: output, shape index: {0}]
  %s8 = inlined_call_operand.hbm [shape: f32[1,4], index: 8, kind: output, shape index: {1}]
  %s9 = inlined_call_operand.hbm [shape: f32[1,5], index: 9, kind: output, shape index: {2}]
  %s10 = inlined_call_operand.hbm [shape: f32[1,1], index: 10, kind: output, shape index: {3}]
  %s11 = inlined_call_operand.hbm [shape: f32[1,1], index: 11, kind: output, shape index: {4}]
  %s12 = inlined_call_operand.hbm [shape: f32[1,1], index: 12, kind: output, shape index: {5}]
  %13 = xla_tuple %s7, %s8, %s9, %s10, %s11, %s12
  %s14 = sld [smem:[#allocation0]]
  $region117: #{tpu_custom_call.1} parent=0
    _
  %s16 = ssub.s32 1, %s14
  %s17 = scalar_select 0, %s16, %s14
  %18 = sst [smem:[#allocation7]] %s0
  $region1: #{tpu_custom_call.1} parent=0
    #allocation8 [shape = 'u8[8192]{0}', space=vmem, size = 0x2000, scoped, tag = 'input window, operand 1']
    #allocation9 [shape = 's32[2]{0}', space=sflag, size = 0x8, scoped, tag = 'scoped memory for tpu_custom_call.1']
    #allocation10 [shape = 's32[2]{0}', space=sflag, size = 0x8, scoped, tag = 'scoped memory for tpu_custom_call.1']
    #allocation11 [shape = 'u8[8192]{0}', space=vmem, size = 0x2000, scoped, tag = 'input window, operand 2']
    #allocation12 [shape = 's32[2]{0}', space=sflag, size = 0x8, scoped, tag = 'scoped memory for tpu_custom_call.1']
    #allocation13 [shape = 'u8[32768]{0}', space=vmem, size = 0x8000, scoped, tag = 'input window, operand 3']
    #allocation14 [shape = 'u8[512]{0}', space=vmem, size = 0x400, scoped, tag = 'output window, operand 0, single buffered']
    #allocation15 [shape = 'u8[512]{0}', space=vmem, size = 0x400, scoped, tag = 'output window, operand 1, single buffered']
    #allocation16 [shape = 's32[1]{0}', space=sflag, size = 0x4, scoped, tag = 'scoped memory for tpu_custom_call.1']
    #allocation17 [shape = 'u8[512]{0}', space=vmem, size = 0x400, scoped, tag = 'output window, operand 2, single buffered']
    #allocation18 [shape = 'u8[512]{0}', space=vmem, size = 0x400, scoped, tag = 'output window, operand 3, single buffered']
    #allocation19 [shape = 's32[1]{0}', space=sflag, size = 0x4, scoped, tag = 'scoped memory for tpu_custom_call.1']
    #allocation20 [shape = 'u8[512]{0}', space=vmem, size = 0x400, scoped, tag = 'output window, operand 4, single buffered']
    #allocation21 [shape = 'u8[512]{0}', space=vmem, size = 0x400, scoped, tag = 'output window, operand 5, single buffered']
    #allocation22 [shape = 's32[1]{0}', space=sflag, size = 0x4, scoped, tag = 'scoped memory for tpu_custom_call.1']
    %19 = vsyncpa [#allocation9], 0
    %s20 = scalar_lea.sflag [#allocation9], 1
    %21 = vsyncpa %s20, 0
    %22 = vsyncpa [#allocation12], 0
    %s23 = scalar_lea.sflag [#allocation12], 1
    %24 = vsyncpa %s23, 0
    %25 = vsyncpa [#allocation10], 0
    %26 = vsyncpa [#allocation16], 0
    %27 = vsyncpa [#allocation19], 0
    %28 = vsyncpa [#allocation22], 0
    loop: start=0, step=1, limit=4
    $region2: #{tpu_custom_call.1} parent=1 // loop_pre_header
      _
    $region3: #{tpu_custom_call.1} parent=1 // loop_header
      %s30 = sphi 0, %s34
      %p31 = scmp.ge.s32.totalorder %s30, 4
      %s40 = sphi 0, %s42
      %s43 = sphi 0, %s40
      %s44 = sphi 0, %s43
      %s60 = sphi 0, %s44
      %s66 = sphi 0, %s68
      %s69 = sphi 0, %s66
      %s70 = sphi 0, %s69
      %s86 = sphi 0, %s70
      %s92 = sphi 0, %s94
      %s95 = sphi 0, %s92
      %s96 = sphi 0, %s95
      %s112 = sphi 0, %s96
      %s116 = sphi 0, %s116
      %s118 = sphi 0, %s116
      %s119 = sphi 0, %s118
      %s133 = sphi 0, %s119
      %s137 = sphi 0, %s137
      %s139 = sphi 0, %s137
      %s140 = sphi 0, %s139
      %s154 = sphi 0, %s140
      %s158 = sphi 0, %s158
      %s160 = sphi 0, %s158
      %s161 = sphi 0, %s160
      %s175 = sphi 0, %s161
      %s179 = sphi 0, %s179
      %s181 = sphi 0, %s179
      %s182 = sphi 0, %s181
      %s196 = sphi 0, %s182
      %s200 = sphi 0, %s200
      %s202 = sphi 0, %s200
      %s203 = sphi 0, %s202
      %s217 = sphi 0, %s203
      %s221 = sphi 0, %s221
      %s223 = sphi 0, %s221
      %s224 = sphi 0, %s223
      %s238 = sphi 0, %s224
      %s242 = sphi 0, %s242
      %s244 = sphi 0, %s242
      %s245 = sphi 0, %s244
      %s259 = sphi 0, %s245
      %s263 = sphi 0, %s263
      %s265 = sphi 0, %s263
      %s266 = sphi 0, %s265
      %s280 = sphi 0, %s266
      %s284 = sphi 0, %s284
      %s286 = sphi 0, %s284
      %s287 = sphi 0, %s286
      %s301 = sphi 0, %s287
    $region4: #{tpu_custom_call.1} parent=1 // loop_header_branch
      %33 = sbr.rel (%p31) target = $region8
    $region5: #{tpu_custom_call.1} parent=1 // loop_body
      %s35 = ssub.s32 %s30, 1
      %s36 = ssub.s32 %s30, 2
      %s37 = sadd.s32 %s30, 1
      %s38 = ssub.s32 %s30, %s37
      %p39 = scmp.eq.s32.totalorder %s38, 0
      %s41 = sadd.s32 %s40, 1
      %s42 = scalar_select %p39, %s40, %s41
      %p45 = pneg %p39
      %p46 = scmp.eq.s32.totalorder %s30, 1
      %p47 = por %p45, %p46
      %p48 = scmp.ne.s32.totalorder %s40, %s43
      %p49 = scmp.eq.s32.totalorder %s30, 0
      %p50 = por %p48, %p49
      %p51 = scmp.ne.s32.totalorder %s40, %s43
      %p52 = scmp.eq.s32.totalorder %s35, 1
      %p53 = por %p51, %p52
      %p54 = scmp.ne.s32.totalorder %s43, %s44
      %p55 = scmp.eq.s32.totalorder %s35, 0
      %p56 = por %p54, %p55
      %p57 = scmp.ne.s32.totalorder %s43, %s44
      %p58 = scmp.eq.s32.totalorder %s36, 1
      %p59 = por %p57, %p58
      %p61 = scmp.ne.s32.totalorder %s44, %s60
      %p62 = scmp.eq.s32.totalorder %s36, 0
      %p63 = por %p61, %p62
      %s64 = ssub.s32 %s30, %s37
      %p65 = scmp.eq.s32.totalorder %s64, 0
      %s67 = sadd.s32 %s66, 1
      %s68 = scalar_select %p65, %s66, %s67
      %p71 = pneg %p65
      %p72 = scmp.eq.s32.totalorder %s30, 1
      %p73 = por %p71, %p72
      %p74 = scmp.ne.s32.totalorder %s66, %s69
      %p75 = scmp.eq.s32.totalorder %s30, 0
      %p76 = por %p74, %p75
      %p77 = scmp.ne.s32.totalorder %s66, %s69
      %p78 = scmp.eq.s32.totalorder %s35, 1
      %p79 = por %p77, %p78
      %p80 = scmp.ne.s32.totalorder %s69, %s70
      %p81 = scmp.eq.s32.totalorder %s35, 0
      %p82 = por %p80, %p81
      %p83 = scmp.ne.s32.totalorder %s69, %s70
      %p84 = scmp.eq.s32.totalorder %s36, 1
      %p85 = por %p83, %p84
      %p87 = scmp.ne.s32.totalorder %s70, %s86
      %p88 = scmp.eq.s32.totalorder %s36, 0
      %p89 = por %p87, %p88
      %s90 = ssub.s32 %s30, %s37
      %p91 = scmp.eq.s32.totalorder %s90, 0
      %s93 = sadd.s32 %s92, 1
      %s94 = scalar_select %p91, %s92, %s93
      %p97 = pneg %p91
      %p98 = scmp.eq.s32.totalorder %s30, 1
      %p99 = por %p97, %p98
      %p100 = scmp.ne.s32.totalorder %s92, %s95
      %p101 = scmp.eq.s32.totalorder %s30, 0
      %p102 = por %p100, %p101
      %p103 = scmp.ne.s32.totalorder %s92, %s95
      %p104 = scmp.eq.s32.totalorder %s35, 1
      %p105 = por %p103, %p104
      %p106 = scmp.ne.s32.totalorder %s95, %s96
      %p107 = scmp.eq.s32.totalorder %s35, 0
      %p108 = por %p106, %p107
      %p109 = scmp.ne.s32.totalorder %s95, %s96
      %p110 = scmp.eq.s32.totalorder %s36, 1
      %p111 = por %p109, %p110
      %p113 = scmp.ne.s32.totalorder %s96, %s112
      %p114 = scmp.eq.s32.totalorder %s36, 0
      %p115 = por %p113, %p114
      %s117 = sadd.s32 %s116, 1
      %p120 = scmp.eq.s32.totalorder %s30, 1
      %p121 = scmp.ne.s32.totalorder %s116, %s118
      %p122 = scmp.eq.s32.totalorder %s30, 0
      %p123 = por %p121, %p122
      %p124 = scmp.ne.s32.totalorder %s116, %s118
      %p125 = scmp.eq.s32.totalorder %s35, 1
      %p126 = por %p124, %p125
      %p127 = scmp.ne.s32.totalorder %s118, %s119
      %p128 = scmp.eq.s32.totalorder %s35, 0
      %p129 = por %p127, %p128
      %p130 = scmp.ne.s32.totalorder %s118, %s119
      %p131 = scmp.eq.s32.totalorder %s36, 1
      %p132 = por %p130, %p131
      %p134 = scmp.ne.s32.totalorder %s119, %s133
      %p135 = scmp.eq.s32.totalorder %s36, 0
      %p136 = por %p134, %p135
      %s138 = sadd.s32 %s137, 1
      %p141 = scmp.eq.s32.totalorder %s30, 1
      %p142 = scmp.ne.s32.totalorder %s137, %s139
      %p143 = scmp.eq.s32.totalorder %s30, 0
      %p144 = por %p142, %p143
      %p145 = scmp.ne.s32.totalorder %s137, %s139
      %p146 = scmp.eq.s32.totalorder %s35, 1
      %p147 = por %p145, %p146
      %p148 = scmp.ne.s32.totalorder %s139, %s140
      %p149 = scmp.eq.s32.totalorder %s35, 0
      %p150 = por %p148, %p149
      %p151 = scmp.ne.s32.totalorder %s139, %s140
      %p152 = scmp.eq.s32.totalorder %s36, 1
      %p153 = por %p151, %p152
      %p155 = scmp.ne.s32.totalorder %s140, %s154
      %p156 = scmp.eq.s32.totalorder %s36, 0
      %p157 = por %p155, %p156
      %s159 = sadd.s32 %s158, 1
      %p162 = scmp.eq.s32.totalorder %s30, 1
      %p163 = scmp.ne.s32.totalorder %s158, %s160
      %p164 = scmp.eq.s32.totalorder %s30, 0
      %p165 = por %p163, %p164
      %p166 = scmp.ne.s32.totalorder %s158, %s160
      %p167 = scmp.eq.s32.totalorder %s35, 1
      %p168 = por %p166, %p167
      %p169 = scmp.ne.s32.totalorder %s160, %s161
      %p170 = scmp.eq.s32.totalorder %s35, 0
      %p171 = por %p169, %p170
      %p172 = scmp.ne.s32.totalorder %s160, %s161
      %p173 = scmp.eq.s32.totalorder %s36, 1
      %p174 = por %p172, %p173
      %p176 = scmp.ne.s32.totalorder %s161, %s175
      %p177 = scmp.eq.s32.totalorder %s36, 0
      %p178 = por %p176, %p177
      %s180 = sadd.s32 %s179, 1
      %p183 = scmp.eq.s32.totalorder %s30, 1
      %p184 = scmp.ne.s32.totalorder %s179, %s181
      %p185 = scmp.eq.s32.totalorder %s30, 0
      %p186 = por %p184, %p185
      %p187 = scmp.ne.s32.totalorder %s179, %s181
      %p188 = scmp.eq.s32.totalorder %s35, 1
      %p189 = por %p187, %p188
      %p190 = scmp.ne.s32.totalorder %s181, %s182
      %p191 = scmp.eq.s32.totalorder %s35, 0
      %p192 = por %p190, %p191
      %p193 = scmp.ne.s32.totalorder %s181, %s182
      %p194 = scmp.eq.s32.totalorder %s36, 1
      %p195 = por %p193, %p194
      %p197 = scmp.ne.s32.totalorder %s182, %s196
      %p198 = scmp.eq.s32.totalorder %s36, 0
      %p199 = por %p197, %p198
      %s201 = sadd.s32 %s200, 1
      %p204 = scmp.eq.s32.totalorder %s30, 1
      %p205 = scmp.ne.s32.totalorder %s200, %s202
      %p206 = scmp.eq.s32.totalorder %s30, 0
      %p207 = por %p205, %p206
      %p208 = scmp.ne.s32.totalorder %s200, %s202
      %p209 = scmp.eq.s32.totalorder %s35, 1
      %p210 = por %p208, %p209
      %p211 = scmp.ne.s32.totalorder %s202, %s203
      %p212 = scmp.eq.s32.totalorder %s35, 0
      %p213 = por %p211, %p212
      %p214 = scmp.ne.s32.totalorder %s202, %s203
      %p215 = scmp.eq.s32.totalorder %s36, 1
      %p216 = por %p214, %p215
      %p218 = scmp.ne.s32.totalorder %s203, %s217
      %p219 = scmp.eq.s32.totalorder %s36, 0
      %p220 = por %p218, %p219
      %s222 = sadd.s32 %s221, 1
      %p225 = scmp.eq.s32.totalorder %s30, 1
      %p226 = scmp.ne.s32.totalorder %s221, %s223
      %p227 = scmp.eq.s32.totalorder %s30, 0
      %p228 = por %p226, %p227
      %p229 = scmp.ne.s32.totalorder %s221, %s223
      %p230 = scmp.eq.s32.totalorder %s35, 1
      %p231 = por %p229, %p230
      %p232 = scmp.ne.s32.totalorder %s223, %s224
      %p233 = scmp.eq.s32.totalorder %s35, 0
      %p234 = por %p232, %p233
      %p235 = scmp.ne.s32.totalorder %s223, %s224
      %p236 = scmp.eq.s32.totalorder %s36, 1
      %p237 = por %p235, %p236
      %p239 = scmp.ne.s32.totalorder %s224, %s238
      %p240 = scmp.eq.s32.totalorder %s36, 0
      %p241 = por %p239, %p240
      %s243 = sadd.s32 %s242, 1
      %p246 = scmp.eq.s32.totalorder %s30, 1
      %p247 = scmp.ne.s32.totalorder %s242, %s244
      %p248 = scmp.eq.s32.totalorder %s30, 0
      %p249 = por %p247, %p248
      %p250 = scmp.ne.s32.totalorder %s242, %s244
      %p251 = scmp.eq.s32.totalorder %s35, 1
      %p252 = por %p250, %p251
      %p253 = scmp.ne.s32.totalorder %s244, %s245
      %p254 = scmp.eq.s32.totalorder %s35, 0
      %p255 = por %p253, %p254
      %p256 = scmp.ne.s32.totalorder %s244, %s245
      %p257 = scmp.eq.s32.totalorder %s36, 1
      %p258 = por %p256, %p257
      %p260 = scmp.ne.s32.totalorder %s245, %s259
      %p261 = scmp.eq.s32.totalorder %s36, 0
      %p262 = por %p260, %p261
      %s264 = sadd.s32 %s263, 1
      %p267 = scmp.eq.s32.totalorder %s30, 1
      %p268 = scmp.ne.s32.totalorder %s263, %s265
      %p269 = scmp.eq.s32.totalorder %s30, 0
      %p270 = por %p268, %p269
      %p271 = scmp.ne.s32.totalorder %s263, %s265
      %p272 = scmp.eq.s32.totalorder %s35, 1
      %p273 = por %p271, %p272
      %p274 = scmp.ne.s32.totalorder %s265, %s266
      %p275 = scmp.eq.s32.totalorder %s35, 0
      %p276 = por %p274, %p275
      %p277 = scmp.ne.s32.totalorder %s265, %s266
      %p278 = scmp.eq.s32.totalorder %s36, 1
      %p279 = por %p277, %p278
      %p281 = scmp.ne.s32.totalorder %s266, %s280
      %p282 = scmp.eq.s32.totalorder %s36, 0
      %p283 = por %p281, %p282
      %s285 = sadd.s32 %s284, 1
      %p288 = scmp.eq.s32.totalorder %s30, 1
      %p289 = scmp.ne.s32.totalorder %s284, %s286
      %p290 = scmp.eq.s32.totalorder %s30, 0
      %p291 = por %p289, %p290
      %p292 = scmp.ne.s32.totalorder %s284, %s286
      %p293 = scmp.eq.s32.totalorder %s35, 1
      %p294 = por %p292, %p293
      %p295 = scmp.ne.s32.totalorder %s286, %s287
      %p296 = scmp.eq.s32.totalorder %s35, 0
      %p297 = por %p295, %p296
      %p298 = scmp.ne.s32.totalorder %s286, %s287
      %p299 = scmp.eq.s32.totalorder %s36, 1
      %p300 = por %p298, %p299
      %p302 = scmp.ne.s32.totalorder %s287, %s301
      %p303 = scmp.eq.s32.totalorder %s36, 0
      %p304 = por %p302, %p303
      %p305 = scmp.le.s32.totalorder 1, %s30
      %p306 = scmp.lt.s32.totalorder %s30, 3
      %p307 = pnand %p305, %p306
      %p308 = pneg %p307
      // Predicated region
      $region9: #{tpu_custom_call.1} parent=5 // pred_check
        _
      $region10: #{tpu_custom_call.1} parent=5 // pred_check_branch
        %310 = sbr.rel (%p307) target = $region12
      $region11: #{tpu_custom_call.1} parent=5 // pred_region
        %s311 = ssub.s32 %s30, 1
        // Predicated region
        $region13: #{tpu_custom_call.1} parent=11 // pred_check
          %p312 = pneg %p129
        $region14: #{tpu_custom_call.1} parent=11 // pred_check_branch
          %314 = sbr.rel (%p312) target = $region16
        $region15: #{tpu_custom_call.1} parent=11 // pred_region
          _
        $region16: #{tpu_custom_call.1} parent=11 // pred_fallthru
          _
        // Predicated region
        $region17: #{tpu_custom_call.1} parent=11 // pred_check
          %p315 = pneg %p150
        $region18: #{tpu_custom_call.1} parent=11 // pred_check_branch
          %317 = sbr.rel (%p315) target = $region20
        $region19: #{tpu_custom_call.1} parent=11 // pred_region
          _
        $region20: #{tpu_custom_call.1} parent=11 // pred_fallthru
          _
        // Predicated region
        $region21: #{tpu_custom_call.1} parent=11 // pred_check
          %p318 = pneg %p171
        $region22: #{tpu_custom_call.1} parent=11 // pred_check_branch
          %320 = sbr.rel (%p318) target = $region24
        $region23: #{tpu_custom_call.1} parent=11 // pred_region
          _
        $region24: #{tpu_custom_call.1} parent=11 // pred_fallthru
          _
      $region12: #{tpu_custom_call.1} parent=5 // pred_fallthru
        _
      %p321 = scmp.lt.s32.totalorder %s30, 2
      // Predicated region
      $region25: #{tpu_custom_call.1} parent=5 // pred_check
        %p322 = pneg %p321
      $region26: #{tpu_custom_call.1} parent=5 // pred_check_branch
        %324 = sbr.rel (%p322) target = $region28
      $region27: #{tpu_custom_call.1} parent=5 // pred_region
        // Predicated region
        $region29: #{tpu_custom_call.1} parent=27 // pred_check
          %p325 = pneg %p50
        $region30: #{tpu_custom_call.1} parent=27 // pred_check_branch
          %327 = sbr.rel (%p325) target = $region32
        $region31: #{tpu_custom_call.1} parent=27 // pred_region
          %s328 = sand.u32 %s40, 1
          %s329 = scalar_lea.sflag [#allocation9], %s328
          %s330 = sand.u32 %s40, 1
          %s331 = smul.addr %s330, 8
          %s332 = scalar_lea.vmem [#allocation8], %s331
          %s334 = ssub.s32 128, 128
          %335 = vsyncadd %s329, %s334
          %s336 = smul.addr %s30, 128
          %s337 = scalar_lea.hbm %s1, %s336
          %s339 = sshll.u32 %s332, 4
          %s340 = int_to_ptr.vmem [resolvable:$true] %s339
          %342 = dma.hbm_to_vmem [thread:$0]  %s337, 128, %s340, %s329
        $region32: #{tpu_custom_call.1} parent=27 // pred_fallthru
          _
        // Predicated region
        $region33: #{tpu_custom_call.1} parent=27 // pred_check
          %p343 = pneg %p76
        $region34: #{tpu_custom_call.1} parent=27 // pred_check_branch
          %345 = sbr.rel (%p343) target = $region36
        $region35: #{tpu_custom_call.1} parent=27 // pred_region
          %s346 = sand.u32 %s30, 1
          %s347 = scalar_lea.sflag [#allocation12], %s346
          %s348 = sand.u32 %s66, 1
          %s349 = smul.addr %s348, 8
          %s350 = scalar_lea.vmem [#allocation11], %s349
          %s351 = smul.u32 8, %s30
          %s352 = ssub.s32 10, %s351
          %p353 = scmp.lt.s32.totalorder %s352, 8
          %s354 = scalar_select %p353, %s352, 8
          %s355 = smul.u32 16, %s354
          %s357 = ssub.s32 128, %s355
          %358 = vsyncadd %s347, %s357
          %p359 = scmp.ne.s32.totalorder 0, %s355
          %s360 = smul.addr %s351, 16
          %s361 = scalar_lea.hbm %s2, %s360
          %s362 = sshll.u32 %s350, 4
          %s363 = int_to_ptr.vmem [resolvable:$true] %s362
          %s364 = sshll.u32 %s354, 4
          %368 = dma.hbm_to_vmem [thread:$0]  (%p359), %s361, %s364, %s363, %s347, 16, 16, 1
        $region36: #{tpu_custom_call.1} parent=27 // pred_fallthru
          _
        // Predicated region
        $region37: #{tpu_custom_call.1} parent=27 // pred_check
          %p369 = pneg %p102
        $region38: #{tpu_custom_call.1} parent=27 // pred_check_branch
          %371 = sbr.rel (%p369) target = $region40
        $region39: #{tpu_custom_call.1} parent=27 // pred_region
          %s372 = sand.u32 %s30, 1
          %s373 = scalar_lea.sflag [#allocation12], %s372
          %s374 = sand.u32 %s92, 1
          %s375 = smul.addr %s374, 32
          %s376 = scalar_lea.vmem [#allocation13], %s375
          %s377 = smul.u32 8, %s30
          %s378 = ssub.s32 10, %s377
          %p379 = scmp.lt.s32.totalorder %s378, 8
          %s380 = scalar_select %p379, %s378, 8
          %s381 = smul.u32 32, %s380
          %s382 = smul.u32 %s381, 2
          %s384 = ssub.s32 512, %s382
          %385 = vsyncadd %s373, %s384
          %p386 = scmp.ne.s32.totalorder 0, %s382
          %s387 = smul.addr %s377, 2
          %s388 = smul.addr %s387, 32
          %s389 = scalar_lea.hbm %s3, %s388
          %s390 = smul.u32 %s380, 2
          %s391 = smul.u32 2, %s390
          %s392 = sshll.u32 %s376, 4
          %s393 = int_to_ptr.vmem [resolvable:$true] %s392
          %s394 = sshll.u32 %s391, 4
          %398 = dma.hbm_to_vmem [thread:$0]  (%p386), %s389, %s394, %s393, %s373, 32, 32, 2
        $region40: #{tpu_custom_call.1} parent=27 // pred_fallthru
          _
      $region28: #{tpu_custom_call.1} parent=5 // pred_fallthru
        _
      %p399 = scmp.le.s32.totalorder 1, %s30
      %p400 = scmp.lt.s32.totalorder %s30, 3
      %p401 = pnand %p399, %p400
      %p402 = pneg %p401
      // Predicated region
      $region41: #{tpu_custom_call.1} parent=5 // pred_check
        _
      $region42: #{tpu_custom_call.1} parent=5 // pred_check_branch
        %404 = sbr.rel (%p401) target = $region44
      $region43: #{tpu_custom_call.1} parent=5 // pred_region
        %s405 = ssub.s32 %s30, 1
        %s406 = sand.u32 %s43, 1
        %s407 = scalar_lea.sflag [#allocation9], %s406
        %s408 = sand.u32 %s43, 1
        %s409 = smul.addr %s408, 8
        %s410 = scalar_lea.vmem [#allocation8], %s409
        // Predicated region
        $region45: #{tpu_custom_call.1} parent=43 // pred_check
          %p411 = pneg %p56
        $region46: #{tpu_custom_call.1} parent=43 // pred_check_branch
          %413 = sbr.rel (%p411) target = $region48
        $region47: #{tpu_custom_call.1} parent=43 // pred_region
          %414 = dma.done %s407, 128
        $region48: #{tpu_custom_call.1} parent=43 // pred_fallthru
          _
        %s415 = sand.u32 %s35, 1
        %s416 = scalar_lea.sflag [#allocation12], %s415
        %s417 = sand.u32 %s69, 1
        %s418 = smul.addr %s417, 8
        %s419 = scalar_lea.vmem [#allocation11], %s418
        // Predicated region
        $region49: #{tpu_custom_call.1} parent=43 // pred_check
          %p420 = pneg %p82
        $region50: #{tpu_custom_call.1} parent=43 // pred_check_branch
          %422 = sbr.rel (%p420) target = $region52
        $region51: #{tpu_custom_call.1} parent=43 // pred_region
          %423 = dma.done %s416, 128
        $region52: #{tpu_custom_call.1} parent=43 // pred_fallthru
          _
        %s424 = sand.u32 %s35, 1
        %s425 = scalar_lea.sflag [#allocation12], %s424
        %s426 = sand.u32 %s95, 1
        %s427 = smul.addr %s426, 32
        %s428 = scalar_lea.vmem [#allocation13], %s427
        // Predicated region
        $region53: #{tpu_custom_call.1} parent=43 // pred_check
          %p429 = pneg %p108
        $region54: #{tpu_custom_call.1} parent=43 // pred_check_branch
          %431 = sbr.rel (%p429) target = $region56
        $region55: #{tpu_custom_call.1} parent=43 // pred_region
          %432 = dma.done %s425, 512
        $region56: #{tpu_custom_call.1} parent=43 // pred_fallthru
          _
        %s433 = sand.u32 %s43, 1
        %s434 = scalar_lea.sflag [#allocation9], %s433
        %s435 = sand.u32 %s43, 1
        %s436 = smul.addr %s435, 8
        %s437 = scalar_lea.vmem [#allocation8], %s436
        %p438 = pneg %p56
        %p439 = pneg %p53
        %s440 = sand.u32 %s35, 1
        %s441 = scalar_lea.sflag [#allocation12], %s440
        %s442 = sand.u32 %s69, 1
        %s443 = smul.addr %s442, 8
        %s444 = scalar_lea.vmem [#allocation11], %s443
        %p445 = pneg %p82
        %p446 = pneg %p79
        %s447 = sand.u32 %s35, 1
        %s448 = scalar_lea.sflag [#allocation12], %s447
        %s449 = sand.u32 %s95, 1
        %s450 = smul.addr %s449, 32
        %s451 = scalar_lea.vmem [#allocation13], %s450
        %p452 = pneg %p108
        %p453 = pneg %p105
        %p454 = pneg %p129
        %p455 = pneg %p126
        %p456 = pneg %p150
        %p457 = pneg %p147
        %p458 = pneg %p171
        %p459 = pneg %p168
        %p460 = pneg %p192
        %p461 = pneg %p189
        %p462 = pneg %p213
        %p463 = pneg %p210
        %p464 = pneg %p234
        %p465 = pneg %p231
        %p466 = pneg %p255
        %p467 = pneg %p252
        %p468 = pneg %p276
        %p469 = pneg %p273
        %p470 = pneg %p297
        %p471 = pneg %p294
        %s472 = smul.u32 8, %s35
        %s473 = ssub.s32 10, %s472
        %p474 = scmp.lt.s32.totalorder %s473, 8
        %s475 = scalar_select %p474, %s473, 8
        %s476 = smul.u32 16, %s475
        %s477 = smul.u32 8, %s35
        %s478 = ssub.s32 10, %s477
        %p479 = scmp.lt.s32.totalorder %s478, 8
        %s480 = scalar_select %p479, %s478, 8
        %s481 = smul.u32 32, %s480
        %s482 = smul.u32 %s481, 2
        %p483 = scmp.eq.s32.totalorder %s35, 0
        // Predicated region
        $region57: #{tpu_custom_call.1} parent=43 // pred_check
          %p484 = pneg %p483
        $region58: #{tpu_custom_call.1} parent=43 // pred_check_branch
          %486 = sbr.rel (%p484) target = $region60
        $region59: #{tpu_custom_call.1} parent=43 // pred_region
          %vm487 = vcmask 98304
          %488 = vst.msk [vmem:[#allocation2] sm:$0x1] %vm487, 0
          %vm489 = vcmask 24576
          %490 = vst.msk [vmem:[#allocation3] sm:$0x1] %vm489, 0
          %vm491 = vcmask 32768
          %492 = vst.msk [vmem:[#allocation4] sm:$0x1] %vm491, 0
          %v493 = vlaneseq
          %v494 = vshrl.u32 %v493, 7
          %v495 = vadd.s32 %v494, 8
          %v496 = vlaneseq
          %v497 = vand.u32 %v496, 127
          %vm498 = vcmp.gt.s32.totalorder %v497, %v494
          %vm499 = vcmp.gt.s32.totalorder %v497, %v495
          %v500 = vsel %vm498, 1, 0
          %v501 = vsel %vm499, 1, 0
          %vm502 = vcmask 97280
          %503 = vst.msk [vmem:[#allocation5] sm:$0xff] %vm502, %v500
          %vm504 = vcmask 93184
          %505 = vst.msk [vmem:[#allocation5 + $0x8] sm:$0xf] %vm504, %v501
        $region60: #{tpu_custom_call.1} parent=43 // pred_fallthru
          _
        %v506 = vld [vmem:[%s410] sm:$0xff]
        %v507 = vld [vmem:[%s419] sm:$0x1]
        %v508 = vld [vmem:[%s419 + $0x1] sm:$0x1]
        %v509 = vld [vmem:[%s419 + $0x2] sm:$0x1]
        %v510 = vld [vmem:[%s419 + $0x3] sm:$0x1]
        %v511 = vld [vmem:[%s419 + $0x4] sm:$0x1]
        %v512 = vld [vmem:[%s419 + $0x5] sm:$0x1]
        %v513 = vld [vmem:[%s419 + $0x6] sm:$0x1]
        %v514 = vld [vmem:[%s419 + $0x7] sm:$0x1]
        %v515 = vld [vmem:[%s428] sm:$0x3]
        %v516 = vld [vmem:[%s428 + $0x2] sm:$0x1]
        %v517 = vld [vmem:[%s428 + $0x4] sm:$0x3]
        %v518 = vld [vmem:[%s428 + $0x6] sm:$0x1]
        %v519 = vld [vmem:[%s428 + $0x8] sm:$0x3]
        %v520 = vld [vmem:[%s428 + $0xa] sm:$0x1]
        %v521 = vld [vmem:[%s428 + $0xc] sm:$0x3]
        %v522 = vld [vmem:[%s428 + $0xe] sm:$0x1]
        %v523 = vld [vmem:[%s428 + $0x10] sm:$0x3]
        %v524 = vld [vmem:[%s428 + $0x12] sm:$0x1]
        %v525 = vld [vmem:[%s428 + $0x14] sm:$0x3]
        %v526 = vld [vmem:[%s428 + $0x16] sm:$0x1]
        %v527 = vld [vmem:[%s428 + $0x18] sm:$0x3]
        %v528 = vld [vmem:[%s428 + $0x1a] sm:$0x1]
        %v529 = vld [vmem:[%s428 + $0x1c] sm:$0x3]
        %v530 = vld [vmem:[%s428 + $0x1e] sm:$0x1]
        %v531 = vunpack.c.0.s8 %v515
        %v532 = vunpack.c.0.s8 %v516
        %v533 = vunpack.c.0.s8 %v517
        %v534 = vunpack.c.0.s8 %v518
        %v535 = vunpack.c.0.s8 %v519
        %v536 = vunpack.c.0.s8 %v520
        %v537 = vunpack.c.0.s8 %v521
        %v538 = vunpack.c.0.s8 %v522
        %v539 = vunpack.c.0.s8 %v523
        %v540 = vunpack.c.0.s8 %v524
        %v541 = vunpack.c.0.s8 %v525
        %v542 = vunpack.c.0.s8 %v526
        %v543 = vunpack.c.0.s8 %v527
        %v544 = vunpack.c.0.s8 %v528
        %v545 = vunpack.c.0.s8 %v529
        %v546 = vunpack.c.0.s8 %v530
        %s547 = smul.u32 %s35, 8
        %v548 = vlaneseq
        %v549 = vshrl.u32 %v548, 7
        %v550 = vstv %s547
        %v551 = vadd.s32 %v550, %v549
        %s552 = sld [smem:[#allocation7]]
        %v553 = vstv %s552
        %vm554 = vcmp.lt.s32.totalorder %v551, %v553
        %v555 = vsel %vm554, 1, 0
        %vm556 = vcmp.eq.s32.totalorder %v555, 1
        %v557 = vsel %vm556, %v506, 4294967295
        %vm558 = vcmp.ge.s32.totalorder %v557, 0
        %v559 = vsel %vm558, 1, 0
        %vm560 = vcmask 97280
        %v561 = vsel %vm560, %v559, 0
        %v562 = vand.u32 %v561, 65535
        %v563 = vshrl.u32 %v561, 16
        %v564 = vcvt.s32.f32 %v562
        %v565 = vcvt.s32.f32 %v563
        %566 = vadd.xlane.f32.xlu0 %v564
        %v567 = vpop.xlane.xlu0 %566
        %568 = vadd.xlane.f32.xlu0 %v565
        %v569 = vpop.xlane.xlu0 %568
        %v570 = vcvt.f32.s32 %v567
        %v571 = vcvt.f32.s32 %v569
        %v572 = vshll.u32 %v571, 16
        %v573 = vadd.s32 %v572, %v570
        %v574 = vlaneseq
        %v575 = vand.u32 %v574, 127
        %vm576 = vcmp.eq.s32.totalorder %v573, %v575
        %vm577 = vmand %vm576, %vm556
        %v578 = vsel %vm577, 1, 0
        %v579 = vld [vmem:[#allocation2] sm:$0x1]
        %vm580 = vcmask 105472
        %v581 = vsel %vm580, %v578, 0
        %v582 = vrot.slane %v581, 4
        %v583 = vadd.s32 %v581, %v582
        %v584 = vrot.slane %v583, 2
        %v585 = vadd.s32 %v583, %v584
        %v586 = vrot.slane %v585, 1
        %v587 = vadd.s32 %v585, %v586
        %v588 = vadd.s32 %v579, %v587
        %vm589 = vcmask 98304
        %590 = vst.msk [vmem:[#allocation2] sm:$0x1] %vm589, %v588
        %vm591 = vcmp.eq.s32.totalorder %v557, 0
        %v592 = vsel %vm591, 1, 0
        %v593 = vsel %vm560, %v592, 0
        %v594 = vand.u32 %v593, 65535
        %v595 = vshrl.u32 %v593, 16
        %v596 = vcvt.s32.f32 %v594
        %v597 = vcvt.s32.f32 %v595
        %598 = vadd.xlane.f32.xlu0 %v596
        %v599 = vpop.xlane.xlu0 %598
        %600 = vadd.xlane.f32.xlu0 %v597
        %v601 = vpop.xlane.xlu0 %600
        %v602 = vcvt.f32.s32 %v599
        %v603 = vcvt.f32.s32 %v601
        %v604 = vshll.u32 %v603, 16
        %v605 = vadd.s32 %v604, %v602
        %v606 = vrot.slane %v605, 4
        %v607 = vadd.s32 %v605, %v606
        %v608 = vrot.slane %v607, 2
        %v609 = vadd.s32 %v607, %v608
        %v610 = vrot.slane %v609, 1
        %v611 = vadd.s32 %v609, %v610
        %s612 = vtos %v611
        %vm613 = vcmp.eq.s32.totalorder %v575, 0
        %v614 = vstv %s612
        %v615 = vsel %vm613, %v614, 0
        %vm616 = vcmp.eq.s32.totalorder %v557, 1
        %v617 = vsel %vm616, 1, 0
        %v618 = vsel %vm560, %v617, 0
        %v619 = vand.u32 %v618, 65535
        %v620 = vshrl.u32 %v618, 16
        %v621 = vcvt.s32.f32 %v619
        %v622 = vcvt.s32.f32 %v620
        %623 = vadd.xlane.f32.xlu0 %v621
        %v624 = vpop.xlane.xlu0 %623
        %625 = vadd.xlane.f32.xlu0 %v622
        %v626 = vpop.xlane.xlu0 %625
        %v627 = vcvt.f32.s32 %v624
        %v628 = vcvt.f32.s32 %v626
        %v629 = vshll.u32 %v628, 16
        %v630 = vadd.s32 %v629, %v627
        %v631 = vrot.slane %v630, 4
        %v632 = vadd.s32 %v630, %v631
        %v633 = vrot.slane %v632, 2
        %v634 = vadd.s32 %v632, %v633
        %v635 = vrot.slane %v634, 1
        %v636 = vadd.s32 %v634, %v635
        %s637 = vtos %v636
        %vm638 = vcmp.eq.s32.totalorder %v575, 1
        %v639 = vstv %s637
        %v640 = vsel %vm638, %v639, 0
        %v641 = vadd.s32 %v615, %v640
        %vm642 = vcmp.eq.s32.totalorder %v557, 2
        %v643 = vsel %vm642, 1, 0
        %v644 = vsel %vm560, %v643, 0
        %v645 = vand.u32 %v644, 65535
        %v646 = vshrl.u32 %v644, 16
        %v647 = vcvt.s32.f32 %v645
        %v648 = vcvt.s32.f32 %v646
        %649 = vadd.xlane.f32.xlu0 %v647
        %v650 = vpop.xlane.xlu0 %649
        %651 = vadd.xlane.f32.xlu0 %v648
        %v652 = vpop.xlane.xlu0 %651
        %v653 = vcvt.f32.s32 %v650
        %v654 = vcvt.f32.s32 %v652
        %v655 = vshll.u32 %v654, 16
        %v656 = vadd.s32 %v655, %v653
        %v657 = vrot.slane %v656, 4
        %v658 = vadd.s32 %v656, %v657
        %v659 = vrot.slane %v658, 2
        %v660 = vadd.s32 %v658, %v659
        %v661 = vrot.slane %v660, 1
        %v662 = vadd.s32 %v660, %v661
        %s663 = vtos %v662
        %vm664 = vcmp.eq.s32.totalorder %v575, 2
        %v665 = vstv %s663
        %v666 = vsel %vm664, %v665, 0
        %v667 = vadd.s32 %v641, %v666
        %vm668 = vcmp.eq.s32.totalorder %v557, 3
        %v669 = vsel %vm668, 1, 0
        %v670 = vsel %vm560, %v669, 0
        %v671 = vand.u32 %v670, 65535
        %v672 = vshrl.u32 %v670, 16
        %v673 = vcvt.s32.f32 %v671
        %v674 = vcvt.s32.f32 %v672
        %675 = vadd.xlane.f32.xlu0 %v673
        %v676 = vpop.xlane.xlu0 %675
        %677 = vadd.xlane.f32.xlu0 %v674
        %v678 = vpop.xlane.xlu0 %677
        %v679 = vcvt.f32.s32 %v676
        %v680 = vcvt.f32.s32 %v678
        %v681 = vshll.u32 %v680, 16
        %v682 = vadd.s32 %v681, %v679
        %v683 = vrot.slane %v682, 4
        %v684 = vadd.s32 %v682, %v683
        %v685 = vrot.slane %v684, 2
        %v686 = vadd.s32 %v684, %v685
        %v687 = vrot.slane %v686, 1
        %v688 = vadd.s32 %v686, %v687
        %s689 = vtos %v688
        %vm690 = vcmp.eq.s32.totalorder %v575, 3
        %v691 = vstv %s689
        %v692 = vsel %vm690, %v691, 0
        %v693 = vadd.s32 %v667, %v692
        %v694 = vld [vmem:[#allocation3] sm:$0x1]
        %v695 = vadd.s32 %v694, %v693
        %vm696 = vcmask 24576
        %697 = vst.msk [vmem:[#allocation3] sm:$0x1] %vm696, %v695
        %v698 = vadd.s32 %v550, 1
        %v699 = vadd.s32 %v550, 2
        %v700 = vadd.s32 %v550, 3
        %v701 = vadd.s32 %v550, 4
        %v702 = vadd.s32 %v550, 5
        %v703 = vadd.s32 %v550, 6
        %v704 = vadd.s32 %v550, 7
        %vm705 = vcmp.ge.s32.totalorder %v507, 0
        %vm706 = vcmp.ge.s32.totalorder %v508, 0
        %vm707 = vcmp.ge.s32.totalorder %v509, 0
        %vm708 = vcmp.ge.s32.totalorder %v510, 0
        %vm709 = vcmp.ge.s32.totalorder %v511, 0
        %vm710 = vcmp.ge.s32.totalorder %v512, 0
        %vm711 = vcmp.ge.s32.totalorder %v513, 0
        %vm712 = vcmp.ge.s32.totalorder %v514, 0
        %s713 = sld [smem:[#allocation7]]
        %v714 = vstv %s713
        %vm715 = vcmp.lt.s32.totalorder %v550, %v714
        %vm716 = vcmp.lt.s32.totalorder %v698, %v714
        %vm717 = vcmp.lt.s32.totalorder %v699, %v714
        %vm718 = vcmp.lt.s32.totalorder %v700, %v714
        %vm719 = vcmp.lt.s32.totalorder %v701, %v714
        %vm720 = vcmp.lt.s32.totalorder %v702, %v714
        %vm721 = vcmp.lt.s32.totalorder %v703, %v714
        %vm722 = vcmp.lt.s32.totalorder %v704, %v714
        %vm723 = vmand %vm705, %vm715
        %vm724 = vmand %vm706, %vm716
        %vm725 = vmand %vm707, %vm717
        %vm726 = vmand %vm708, %vm718
        %vm727 = vmand %vm709, %vm719
        %vm728 = vmand %vm710, %vm720
        %vm729 = vmand %vm711, %vm721
        %vm730 = vmand %vm712, %vm722
        %v731 = vld [vmem:[#allocation5] sm:$0xff]
        %v732 = vld [vmem:[#allocation5 + $0x8] sm:$0xf]
        %vm733 = vcmp.gt.s32.totalorder %v731, 0
        %vm734 = vcmp.gt.s32.totalorder %v732, 0
        %v735 = vsel %vm723, 1, 0
        %v736 = vsel %vm724, 1, 0
        %v737 = vsel %vm725, 1, 0
        %v738 = vsel %vm726, 1, 0
        %v739 = vsel %vm727, 1, 0
        %v740 = vsel %vm728, 1, 0
        %v741 = vsel %vm729, 1, 0
        %v742 = vsel %vm730, 1, 0
        %v743 = vlaneseq
        %v744 = vshrl.u32 %v743, 7
        %v745 = vsub.s32 0, %v744
        %v746 = vrot.slane %v735, %v745
        %v747 = vlaneseq
        %v748 = vshrl.u32 %v747, 7
        %v749 = vsub.s32 0, %v748
        %v750 = vrot.slane %v736, %v749
        %v751 = vlaneseq
        %v752 = vshrl.u32 %v751, 7
        %v753 = vsub.s32 0, %v752
        %v754 = vrot.slane %v737, %v753
        %v755 = vlaneseq
        %v756 = vshrl.u32 %v755, 7
        %v757 = vsub.s32 0, %v756
        %v758 = vrot.slane %v738, %v757
        %v759 = vlaneseq
        %v760 = vshrl.u32 %v759, 7
        %v761 = vsub.s32 0, %v760
        %v762 = vrot.slane %v739, %v761
        %v763 = vlaneseq
        %v764 = vshrl.u32 %v763, 7
        %v765 = vsub.s32 0, %v764
        %v766 = vrot.slane %v740, %v765
        %v767 = vlaneseq
        %v768 = vshrl.u32 %v767, 7
        %v769 = vsub.s32 0, %v768
        %v770 = vrot.slane %v741, %v769
        %v771 = vlaneseq
        %v772 = vshrl.u32 %v771, 7
        %v773 = vsub.s32 0, %v772
        %v774 = vrot.slane %v742, %v773
        %vm775 = vcmp.eq.s32.totalorder %v746, 1
        %vm776 = vcmp.eq.s32.totalorder %v750, 1
        %vm777 = vcmp.eq.s32.totalorder %v754, 1
        %vm778 = vcmp.eq.s32.totalorder %v758, 1
        %vm779 = vcmp.eq.s32.totalorder %v762, 1
        %vm780 = vcmp.eq.s32.totalorder %v766, 1
        %vm781 = vcmp.eq.s32.totalorder %v770, 1
        %vm782 = vcmp.eq.s32.totalorder %v774, 1
        %v783 = vsel %vm733, 1, 0
        %v784 = vsel %vm734, 1, 0
        %vm785 = vcmp.eq.s32.totalorder %v783, 1
        %vm786 = vcmp.eq.s32.totalorder %v784, 1
        %vm787 = vmand %vm775, %vm785
        %vm788 = vmand %vm775, %vm786
        %vm789 = vmand %vm776, %vm785
        %vm790 = vmand %vm776, %vm786
        %vm791 = vmand %vm777, %vm785
        %vm792 = vmand %vm777, %vm786
        %vm793 = vmand %vm778, %vm785
        %vm794 = vmand %vm778, %vm786
        %vm795 = vmand %vm779, %vm785
        %vm796 = vmand %vm779, %vm786
        %vm797 = vmand %vm780, %vm785
        %vm798 = vmand %vm780, %vm786
        %vm799 = vmand %vm781, %vm785
        %vm800 = vmand %vm781, %vm786
        %vm801 = vmand %vm782, %vm785
        %vm802 = vmand %vm782, %vm786
        %v803 = vsel %vm787, %v531, 4294967295
        %v804 = vsel %vm788, %v532, 4294967295
        %v805 = vsel %vm789, %v533, 4294967295
        %v806 = vsel %vm790, %v534, 4294967295
        %v807 = vsel %vm791, %v535, 4294967295
        %v808 = vsel %vm792, %v536, 4294967295
        %v809 = vsel %vm793, %v537, 4294967295
        %v810 = vsel %vm794, %v538, 4294967295
        %v811 = vsel %vm795, %v539, 4294967295
        %v812 = vsel %vm796, %v540, 4294967295
        %v813 = vsel %vm797, %v541, 4294967295
        %v814 = vsel %vm798, %v542, 4294967295
        %v815 = vsel %vm799, %v543, 4294967295
        %v816 = vsel %vm800, %v544, 4294967295
        %v817 = vsel %vm801, %v545, 4294967295
        %v818 = vsel %vm802, %v546, 4294967295
        %vm819 = vcmp.eq.s32.totalorder %v803, 0
        %vm820 = vcmp.eq.s32.totalorder %v804, 0
        %vm821 = vcmp.eq.s32.totalorder %v805, 0
        %vm822 = vcmp.eq.s32.totalorder %v806, 0
        %vm823 = vcmp.eq.s32.totalorder %v807, 0
        %vm824 = vcmp.eq.s32.totalorder %v808, 0
        %vm825 = vcmp.eq.s32.totalorder %v809, 0
        %vm826 = vcmp.eq.s32.totalorder %v810, 0
        %vm827 = vcmp.eq.s32.totalorder %v811, 0
        %vm828 = vcmp.eq.s32.totalorder %v812, 0
        %vm829 = vcmp.eq.s32.totalorder %v813, 0
        %vm830 = vcmp.eq.s32.totalorder %v814, 0
        %vm831 = vcmp.eq.s32.totalorder %v815, 0
        %vm832 = vcmp.eq.s32.totalorder %v816, 0
        %vm833 = vcmp.eq.s32.totalorder %v817, 0
        %vm834 = vcmp.eq.s32.totalorder %v818, 0
        %v835 = vsel %vm819, 1, 0
        %v836 = vsel %vm820, 1, 0
        %v837 = vsel %vm821, 1, 0
        %v838 = vsel %vm822, 1, 0
        %v839 = vsel %vm823, 1, 0
        %v840 = vsel %vm824, 1, 0
        %v841 = vsel %vm825, 1, 0
        %v842 = vsel %vm826, 1, 0
        %v843 = vsel %vm827, 1, 0
        %v844 = vsel %vm828, 1, 0
        %v845 = vsel %vm829, 1, 0
        %v846 = vsel %vm830, 1, 0
        %v847 = vsel %vm831, 1, 0
        %v848 = vsel %vm832, 1, 0
        %v849 = vsel %vm833, 1, 0
        %v850 = vsel %vm834, 1, 0
        %v851 = vsel %vm560, %v835, 0
        %vm852 = vcmask 93184
        %v853 = vsel %vm852, %v836, 0
        %v854 = vsel %vm560, %v837, 0
        %v855 = vsel %vm852, %v838, 0
        %v856 = vsel %vm560, %v839, 0
        %v857 = vadd.s32 %v851, %v856
        %v858 = vsel %vm852, %v840, 0
        %v859 = vadd.s32 %v853, %v858
        %v860 = vsel %vm560, %v841, 0
        %v861 = vadd.s32 %v854, %v860
        %v862 = vsel %vm852, %v842, 0
        %v863 = vadd.s32 %v855, %v862
        %v864 = vsel %vm560, %v843, 0
        %v865 = vadd.s32 %v857, %v864
        %v866 = vsel %vm852, %v844, 0
        %v867 = vadd.s32 %v859, %v866
        %v868 = vsel %vm560, %v845, 0
        %v869 = vadd.s32 %v861, %v868
        %v870 = vsel %vm852, %v846, 0
        %v871 = vadd.s32 %v863, %v870
        %v872 = vsel %vm560, %v847, 0
        %v873 = vadd.s32 %v865, %v872
        %v874 = vsel %vm852, %v848, 0
        %v875 = vadd.s32 %v867, %v874
        %v876 = vsel %vm560, %v849, 0
        %v877 = vadd.s32 %v869, %v876
        %v878 = vsel %vm852, %v850, 0
        %v879 = vadd.s32 %v871, %v878
        %v880 = vadd.s32 %v873, %v875
        %v881 = vadd.s32 %v877, %v879
        %v882 = vadd.s32 %v880, %v881
        %v883 = vand.u32 %v882, 65535
        %v884 = vshrl.u32 %v882, 16
        %v885 = vcvt.s32.f32 %v883
        %v886 = vcvt.s32.f32 %v884
        %887 = vadd.xlane.f32.xlu0 %v885
        %v888 = vpop.xlane.xlu0 %887
        %889 = vadd.xlane.f32.xlu0 %v886
        %v890 = vpop.xlane.xlu0 %889
        %v891 = vcvt.f32.s32 %v888
        %v892 = vcvt.f32.s32 %v890
        %v893 = vshll.u32 %v892, 16
        %v894 = vadd.s32 %v893, %v891
        %v895 = vrot.slane %v894, 4
        %v896 = vadd.s32 %v894, %v895
        %v897 = vrot.slane %v896, 2
        %v898 = vadd.s32 %v896, %v897
        %v899 = vrot.slane %v898, 1
        %v900 = vadd.s32 %v898, %v899
        %s901 = vtos %v900
        %v902 = vstv %s901
        %v903 = vsel %vm613, %v902, 0
        %vm904 = vcmp.eq.s32.totalorder %v803, 1
        %vm905 = vcmp.eq.s32.totalorder %v804, 1
        %vm906 = vcmp.eq.s32.totalorder %v805, 1
        %vm907 = vcmp.eq.s32.totalorder %v806, 1
        %vm908 = vcmp.eq.s32.totalorder %v807, 1
        %vm909 = vcmp.eq.s32.totalorder %v808, 1
        %vm910 = vcmp.eq.s32.totalorder %v809, 1
        %vm911 = vcmp.eq.s32.totalorder %v810, 1
        %vm912 = vcmp.eq.s32.totalorder %v811, 1
        %vm913 = vcmp.eq.s32.totalorder %v812, 1
        %vm914 = vcmp.eq.s32.totalorder %v813, 1
        %vm915 = vcmp.eq.s32.totalorder %v814, 1
        %vm916 = vcmp.eq.s32.totalorder %v815, 1
        %vm917 = vcmp.eq.s32.totalorder %v816, 1
        %vm918 = vcmp.eq.s32.totalorder %v817, 1
        %vm919 = vcmp.eq.s32.totalorder %v818, 1
        %v920 = vsel %vm904, 1, 0
        %v921 = vsel %vm905, 1, 0
        %v922 = vsel %vm906, 1, 0
        %v923 = vsel %vm907, 1, 0
        %v924 = vsel %vm908, 1, 0
        %v925 = vsel %vm909, 1, 0
        %v926 = vsel %vm910, 1, 0
        %v927 = vsel %vm911, 1, 0
        %v928 = vsel %vm912, 1, 0
        %v929 = vsel %vm913, 1, 0
        %v930 = vsel %vm914, 1, 0
        %v931 = vsel %vm915, 1, 0
        %v932 = vsel %vm916, 1, 0
        %v933 = vsel %vm917, 1, 0
        %v934 = vsel %vm918, 1, 0
        %v935 = vsel %vm919, 1, 0
        %v936 = vsel %vm560, %v920, 0
        %v937 = vsel %vm852, %v921, 0
        %v938 = vsel %vm560, %v922, 0
        %v939 = vsel %vm852, %v923, 0
        %v940 = vsel %vm560, %v924, 0
        %v941 = vadd.s32 %v936, %v940
        %v942 = vsel %vm852, %v925, 0
        %v943 = vadd.s32 %v937, %v942
        %v944 = vsel %vm560, %v926, 0
        %v945 = vadd.s32 %v938, %v944
        %v946 = vsel %vm852, %v927, 0
        %v947 = vadd.s32 %v939, %v946
        %v948 = vsel %vm560, %v928, 0
        %v949 = vadd.s32 %v941, %v948
        %v950 = vsel %vm852, %v929, 0
        %v951 = vadd.s32 %v943, %v950
        %v952 = vsel %vm560, %v930, 0
        %v953 = vadd.s32 %v945, %v952
        %v954 = vsel %vm852, %v931, 0
        %v955 = vadd.s32 %v947, %v954
        %v956 = vsel %vm560, %v932, 0
        %v957 = vadd.s32 %v949, %v956
        %v958 = vsel %vm852, %v933, 0
        %v959 = vadd.s32 %v951, %v958
        %v960 = vsel %vm560, %v934, 0
        %v961 = vadd.s32 %v953, %v960
        %v962 = vsel %vm852, %v935, 0
        %v963 = vadd.s32 %v955, %v962
        %v964 = vadd.s32 %v957, %v959
        %v965 = vadd.s32 %v961, %v963
        %v966 = vadd.s32 %v964, %v965
        %v967 = vand.u32 %v966, 65535
        %v968 = vshrl.u32 %v966, 16
        %v969 = vcvt.s32.f32 %v967
        %v970 = vcvt.s32.f32 %v968
        %971 = vadd.xlane.f32.xlu0 %v969
        %v972 = vpop.xlane.xlu0 %971
        %973 = vadd.xlane.f32.xlu0 %v970
        %v974 = vpop.xlane.xlu0 %973
        %v975 = vcvt.f32.s32 %v972
        %v976 = vcvt.f32.s32 %v974
        %v977 = vshll.u32 %v976, 16
        %v978 = vadd.s32 %v977, %v975
        %v979 = vrot.slane %v978, 4
        %v980 = vadd.s32 %v978, %v979
        %v981 = vrot.slane %v980, 2
        %v982 = vadd.s32 %v980, %v981
        %v983 = vrot.slane %v982, 1
        %v984 = vadd.s32 %v982, %v983
        %s985 = vtos %v984
        %v986 = vstv %s985
        %v987 = vsel %vm638, %v986, 0
        %v988 = vadd.s32 %v903, %v987
        %vm989 = vcmp.eq.s32.totalorder %v803, 2
        %vm990 = vcmp.eq.s32.totalorder %v804, 2
        %vm991 = vcmp.eq.s32.totalorder %v805, 2
        %vm992 = vcmp.eq.s32.totalorder %v806, 2
        %vm993 = vcmp.eq.s32.totalorder %v807, 2
        %vm994 = vcmp.eq.s32.totalorder %v808, 2
        %vm995 = vcmp.eq.s32.totalorder %v809, 2
        %vm996 = vcmp.eq.s32.totalorder %v810, 2
        %vm997 = vcmp.eq.s32.totalorder %v811, 2
        %vm998 = vcmp.eq.s32.totalorder %v812, 2
        %vm999 = vcmp.eq.s32.totalorder %v813, 2
        %vm1000 = vcmp.eq.s32.totalorder %v814, 2
        %vm1001 = vcmp.eq.s32.totalorder %v815, 2
        %vm1002 = vcmp.eq.s32.totalorder %v816, 2
        %vm1003 = vcmp.eq.s32.totalorder %v817, 2
        %vm1004 = vcmp.eq.s32.totalorder %v818, 2
        %v1005 = vsel %vm989, 1, 0
        %v1006 = vsel %vm990, 1, 0
        %v1007 = vsel %vm991, 1, 0
        %v1008 = vsel %vm992, 1, 0
        %v1009 = vsel %vm993, 1, 0
        %v1010 = vsel %vm994, 1, 0
        %v1011 = vsel %vm995, 1, 0
        %v1012 = vsel %vm996, 1, 0
        %v1013 = vsel %vm997, 1, 0
        %v1014 = vsel %vm998, 1, 0
        %v1015 = vsel %vm999, 1, 0
        %v1016 = vsel %vm1000, 1, 0
        %v1017 = vsel %vm1001, 1, 0
        %v1018 = vsel %vm1002, 1, 0
        %v1019 = vsel %vm1003, 1, 0
        %v1020 = vsel %vm1004, 1, 0
        %v1021 = vsel %vm560, %v1005, 0
        %v1022 = vsel %vm852, %v1006, 0
        %v1023 = vsel %vm560, %v1007, 0
        %v1024 = vsel %vm852, %v1008, 0
        %v1025 = vsel %vm560, %v1009, 0
        %v1026 = vadd.s32 %v1021, %v1025
        %v1027 = vsel %vm852, %v1010, 0
        %v1028 = vadd.s32 %v1022, %v1027
        %v1029 = vsel %vm560, %v1011, 0
        %v1030 = vadd.s32 %v1023, %v1029
        %v1031 = vsel %vm852, %v1012, 0
        %v1032 = vadd.s32 %v1024, %v1031
        %v1033 = vsel %vm560, %v1013, 0
        %v1034 = vadd.s32 %v1026, %v1033
        %v1035 = vsel %vm852, %v1014, 0
        %v1036 = vadd.s32 %v1028, %v1035
        %v1037 = vsel %vm560, %v1015, 0
        %v1038 = vadd.s32 %v1030, %v1037
        %v1039 = vsel %vm852, %v1016, 0
        %v1040 = vadd.s32 %v1032, %v1039
        %v1041 = vsel %vm560, %v1017, 0
        %v1042 = vadd.s32 %v1034, %v1041
        %v1043 = vsel %vm852, %v1018, 0
        %v1044 = vadd.s32 %v1036, %v1043
        %v1045 = vsel %vm560, %v1019, 0
        %v1046 = vadd.s32 %v1038, %v1045
        %v1047 = vsel %vm852, %v1020, 0
        %v1048 = vadd.s32 %v1040, %v1047
        %v1049 = vadd.s32 %v1042, %v1044
        %v1050 = vadd.s32 %v1046, %v1048
        %v1051 = vadd.s32 %v1049, %v1050
        %v1052 = vand.u32 %v1051, 65535
        %v1053 = vshrl.u32 %v1051, 16
        %v1054 = vcvt.s32.f32 %v1052
        %v1055 = vcvt.s32.f32 %v1053
        %1056 = vadd.xlane.f32.xlu0 %v1054
        %v1057 = vpop.xlane.xlu0 %1056
        %1058 = vadd.xlane.f32.xlu0 %v1055
        %v1059 = vpop.xlane.xlu0 %1058
        %v1060 = vcvt.f32.s32 %v1057
        %v1061 = vcvt.f32.s32 %v1059
        %v1062 = vshll.u32 %v1061, 16
        %v1063 = vadd.s32 %v1062, %v1060
        %v1064 = vrot.slane %v1063, 4
        %v1065 = vadd.s32 %v1063, %v1064
        %v1066 = vrot.slane %v1065, 2
        %v1067 = vadd.s32 %v1065, %v1066
        %v1068 = vrot.slane %v1067, 1
        %v1069 = vadd.s32 %v1067, %v1068
        %s1070 = vtos %v1069
        %v1071 = vstv %s1070
        %v1072 = vsel %vm664, %v1071, 0
        %v1073 = vadd.s32 %v988, %v1072
        %vm1074 = vcmp.eq.s32.totalorder %v803, 3
        %vm1075 = vcmp.eq.s32.totalorder %v804, 3
        %vm1076 = vcmp.eq.s32.totalorder %v805, 3
        %vm1077 = vcmp.eq.s32.totalorder %v806, 3
        %vm1078 = vcmp.eq.s32.totalorder %v807, 3
        %vm1079 = vcmp.eq.s32.totalorder %v808, 3
        %vm1080 = vcmp.eq.s32.totalorder %v809, 3
        %vm1081 = vcmp.eq.s32.totalorder %v810, 3
        %vm1082 = vcmp.eq.s32.totalorder %v811, 3
        %vm1083 = vcmp.eq.s32.totalorder %v812, 3
        %vm1084 = vcmp.eq.s32.totalorder %v813, 3
        %vm1085 = vcmp.eq.s32.totalorder %v814, 3
        %vm1086 = vcmp.eq.s32.totalorder %v815, 3
        %vm1087 = vcmp.eq.s32.totalorder %v816, 3
        %vm1088 = vcmp.eq.s32.totalorder %v817, 3
        %vm1089 = vcmp.eq.s32.totalorder %v818, 3
        %v1090 = vsel %vm1074, 1, 0
        %v1091 = vsel %vm1075, 1, 0
        %v1092 = vsel %vm1076, 1, 0
        %v1093 = vsel %vm1077, 1, 0
        %v1094 = vsel %vm1078, 1, 0
        %v1095 = vsel %vm1079, 1, 0
        %v1096 = vsel %vm1080, 1, 0
        %v1097 = vsel %vm1081, 1, 0
        %v1098 = vsel %vm1082, 1, 0
        %v1099 = vsel %vm1083, 1, 0
        %v1100 = vsel %vm1084, 1, 0
        %v1101 = vsel %vm1085, 1, 0
        %v1102 = vsel %vm1086, 1, 0
        %v1103 = vsel %vm1087, 1, 0
        %v1104 = vsel %vm1088, 1, 0
        %v1105 = vsel %vm1089, 1, 0
        %v1106 = vsel %vm560, %v1090, 0
        %v1107 = vsel %vm852, %v1091, 0
        %v1108 = vsel %vm560, %v1092, 0
        %v1109 = vsel %vm852, %v1093, 0
        %v1110 = vsel %vm560, %v1094, 0
        %v1111 = vadd.s32 %v1106, %v1110
        %v1112 = vsel %vm852, %v1095, 0
        %v1113 = vadd.s32 %v1107, %v1112
        %v1114 = vsel %vm560, %v1096, 0
        %v1115 = vadd.s32 %v1108, %v1114
        %v1116 = vsel %vm852, %v1097, 0
        %v1117 = vadd.s32 %v1109, %v1116
        %v1118 = vsel %vm560, %v1098, 0
        %v1119 = vadd.s32 %v1111, %v1118
        %v1120 = vsel %vm852, %v1099, 0
        %v1121 = vadd.s32 %v1113, %v1120
        %v1122 = vsel %vm560, %v1100, 0
        %v1123 = vadd.s32 %v1115, %v1122
        %v1124 = vsel %vm852, %v1101, 0
        %v1125 = vadd.s32 %v1117, %v1124
        %v1126 = vsel %vm560, %v1102, 0
        %v1127 = vadd.s32 %v1119, %v1126
        %v1128 = vsel %vm852, %v1103, 0
        %v1129 = vadd.s32 %v1121, %v1128
        %v1130 = vsel %vm560, %v1104, 0
        %v1131 = vadd.s32 %v1123, %v1130
        %v1132 = vsel %vm852, %v1105, 0
        %v1133 = vadd.s32 %v1125, %v1132
        %v1134 = vadd.s32 %v1127, %v1129
        %v1135 = vadd.s32 %v1131, %v1133
        %v1136 = vadd.s32 %v1134, %v1135
        %v1137 = vand.u32 %v1136, 65535
        %v1138 = vshrl.u32 %v1136, 16
        %v1139 = vcvt.s32.f32 %v1137
        %v1140 = vcvt.s32.f32 %v1138
        %1141 = vadd.xlane.f32.xlu0 %v1139
        %v1142 = vpop.xlane.xlu0 %1141
        %1143 = vadd.xlane.f32.xlu0 %v1140
        %v1144 = vpop.xlane.xlu0 %1143
        %v1145 = vcvt.f32.s32 %v1142
        %v1146 = vcvt.f32.s32 %v1144
        %v1147 = vshll.u32 %v1146, 16
        %v1148 = vadd.s32 %v1147, %v1145
        %v1149 = vrot.slane %v1148, 4
        %v1150 = vadd.s32 %v1148, %v1149
        %v1151 = vrot.slane %v1150, 2
        %v1152 = vadd.s32 %v1150, %v1151
        %v1153 = vrot.slane %v1152, 1
        %v1154 = vadd.s32 %v1152, %v1153
        %s1155 = vtos %v1154
        %v1156 = vstv %s1155
        %v1157 = vsel %vm690, %v1156, 0
        %v1158 = vadd.s32 %v1073, %v1157
        %vm1159 = vcmp.eq.s32.totalorder %v803, 4
        %vm1160 = vcmp.eq.s32.totalorder %v804, 4
        %vm1161 = vcmp.eq.s32.totalorder %v805, 4
        %vm1162 = vcmp.eq.s32.totalorder %v806, 4
        %vm1163 = vcmp.eq.s32.totalorder %v807, 4
        %vm1164 = vcmp.eq.s32.totalorder %v808, 4
        %vm1165 = vcmp.eq.s32.totalorder %v809, 4
        %vm1166 = vcmp.eq.s32.totalorder %v810, 4
        %vm1167 = vcmp.eq.s32.totalorder %v811, 4
        %vm1168 = vcmp.eq.s32.totalorder %v812, 4
        %vm1169 = vcmp.eq.s32.totalorder %v813, 4
        %vm1170 = vcmp.eq.s32.totalorder %v814, 4
        %vm1171 = vcmp.eq.s32.totalorder %v815, 4
        %vm1172 = vcmp.eq.s32.totalorder %v816, 4
        %vm1173 = vcmp.eq.s32.totalorder %v817, 4
        %vm1174 = vcmp.eq.s32.totalorder %v818, 4
        %v1175 = vsel %vm1159, 1, 0
        %v1176 = vsel %vm1160, 1, 0
        %v1177 = vsel %vm1161, 1, 0
        %v1178 = vsel %vm1162, 1, 0
        %v1179 = vsel %vm1163, 1, 0
        %v1180 = vsel %vm1164, 1, 0
        %v1181 = vsel %vm1165, 1, 0
        %v1182 = vsel %vm1166, 1, 0
        %v1183 = vsel %vm1167, 1, 0
        %v1184 = vsel %vm1168, 1, 0
        %v1185 = vsel %vm1169, 1, 0
        %v1186 = vsel %vm1170, 1, 0
        %v1187 = vsel %vm1171, 1, 0
        %v1188 = vsel %vm1172, 1, 0
        %v1189 = vsel %vm1173, 1, 0
        %v1190 = vsel %vm1174, 1, 0
        %v1191 = vsel %vm560, %v1175, 0
        %v1192 = vsel %vm852, %v1176, 0
        %v1193 = vsel %vm560, %v1177, 0
        %v1194 = vsel %vm852, %v1178, 0
        %v1195 = vsel %vm560, %v1179, 0
        %v1196 = vadd.s32 %v1191, %v1195
        %v1197 = vsel %vm852, %v1180, 0
        %v1198 = vadd.s32 %v1192, %v1197
        %v1199 = vsel %vm560, %v1181, 0
        %v1200 = vadd.s32 %v1193, %v1199
        %v1201 = vsel %vm852, %v1182, 0
        %v1202 = vadd.s32 %v1194, %v1201
        %v1203 = vsel %vm560, %v1183, 0
        %v1204 = vadd.s32 %v1196, %v1203
        %v1205 = vsel %vm852, %v1184, 0
        %v1206 = vadd.s32 %v1198, %v1205
        %v1207 = vsel %vm560, %v1185, 0
        %v1208 = vadd.s32 %v1200, %v1207
        %v1209 = vsel %vm852, %v1186, 0
        %v1210 = vadd.s32 %v1202, %v1209
        %v1211 = vsel %vm560, %v1187, 0
        %v1212 = vadd.s32 %v1204, %v1211
        %v1213 = vsel %vm852, %v1188, 0
        %v1214 = vadd.s32 %v1206, %v1213
        %v1215 = vsel %vm560, %v1189, 0
        %v1216 = vadd.s32 %v1208, %v1215
        %v1217 = vsel %vm852, %v1190, 0
        %v1218 = vadd.s32 %v1210, %v1217
        %v1219 = vadd.s32 %v1212, %v1214
        %v1220 = vadd.s32 %v1216, %v1218
        %v1221 = vadd.s32 %v1219, %v1220
        %v1222 = vand.u32 %v1221, 65535
        %v1223 = vshrl.u32 %v1221, 16
        %v1224 = vcvt.s32.f32 %v1222
        %v1225 = vcvt.s32.f32 %v1223
        %1226 = vadd.xlane.f32.xlu0 %v1224
        %v1227 = vpop.xlane.xlu0 %1226
        %1228 = vadd.xlane.f32.xlu0 %v1225
        %v1229 = vpop.xlane.xlu0 %1228
        %v1230 = vcvt.f32.s32 %v1227
        %v1231 = vcvt.f32.s32 %v1229
        %v1232 = vshll.u32 %v1231, 16
        %v1233 = vadd.s32 %v1232, %v1230
        %v1234 = vrot.slane %v1233, 4
        %v1235 = vadd.s32 %v1233, %v1234
        %v1236 = vrot.slane %v1235, 2
        %v1237 = vadd.s32 %v1235, %v1236
        %v1238 = vrot.slane %v1237, 1
        %v1239 = vadd.s32 %v1237, %v1238
        %s1240 = vtos %v1239
        %vm1241 = vcmp.eq.s32.totalorder %v575, 4
        %v1242 = vstv %s1240
        %v1243 = vsel %vm1241, %v1242, 0
        %v1244 = vadd.s32 %v1158, %v1243
        %v1245 = vld [vmem:[#allocation4] sm:$0x1]
        %v1246 = vadd.s32 %v1245, %v1244
        %vm1247 = vcmask 32768
        %1248 = vst.msk [vmem:[#allocation4] sm:$0x1] %vm1247, %v1246
        %p1249 = scmp.eq.s32.totalorder %s35, 1
        // Predicated region
        $region61: #{tpu_custom_call.1} parent=43 // pred_check
          %p1250 = pneg %p1249
        $region62: #{tpu_custom_call.1} parent=43 // pred_check_branch
          %1252 = sbr.rel (%p1250) target = $region64
        $region63: #{tpu_custom_call.1} parent=43 // pred_region
          %v1253 = vld [vmem:[#allocation2] sm:$0x1]
          %v1254 = vcvt.s32.f32 %v1253
          %v1255 = vsel %vm589, %v1254, 0.0
          %1256 = vadd.xlane.f32.xlu0 %v1255
          %v1257 = vpop.xlane.xlu0 %1256
          %v1258 = vrot.slane %v1257, 4
          %v1259 = vadd.f32 %v1257, %v1258
          %v1260 = vrot.slane %v1259, 2
          %v1261 = vadd.f32 %v1259, %v1260
          %v1262 = vrot.slane %v1261, 1
          %v1263 = vadd.f32 %v1261, %v1262
          %s1264 = vtos %v1263
          %s1265 = smax.f32 %s1264, 1.0
          %v1266 = vstv %s1265
          %v1267 = vrcp.pop %v1266
          %v1268 = vmul.f32 %v1254, %v1267
          %v1269 = vld [vmem:[#allocation3] sm:$0x1]
          %v1270 = vcvt.s32.f32 %v1269
          %v1271 = vsel %vm696, %v1270, 0.0
          %1272 = vadd.xlane.f32.xlu0 %v1271
          %v1273 = vpop.xlane.xlu0 %1272
          %v1274 = vrot.slane %v1273, 4
          %v1275 = vadd.f32 %v1273, %v1274
          %v1276 = vrot.slane %v1275, 2
          %v1277 = vadd.f32 %v1275, %v1276
          %v1278 = vrot.slane %v1277, 1
          %v1279 = vadd.f32 %v1277, %v1278
          %s1280 = vtos %v1279
          %s1281 = smax.f32 %s1280, 1.0
          %v1282 = vstv %s1281
          %v1283 = vrcp.pop %v1282
          %v1284 = vmul.f32 %v1270, %v1283
          %v1285 = vld [vmem:[#allocation4] sm:$0x1]
          %v1286 = vcvt.s32.f32 %v1285
          %v1287 = vsel %vm1247, %v1286, 0.0
          %1288 = vadd.xlane.f32.xlu0 %v1287
          %v1289 = vpop.xlane.xlu0 %1288
          %v1290 = vrot.slane %v1289, 4
          %v1291 = vadd.f32 %v1289, %v1290
          %v1292 = vrot.slane %v1291, 2
          %v1293 = vadd.f32 %v1291, %v1292
          %v1294 = vrot.slane %v1293, 1
          %v1295 = vadd.f32 %v1293, %v1294
          %s1296 = vtos %v1295
          %s1297 = smax.f32 %s1296, 1.0
          %v1298 = vstv %s1297
          %v1299 = vrcp.pop %v1298
          %v1300 = vmul.f32 %v1286, %v1299
          %1301 = vst.msk [vmem:[#allocation14] sm:$0x1] %vm589, %v1268
          %1302 = vst.msk [vmem:[#allocation15] sm:$0x1] %vm696, %v1284
          %1303 = vst.msk [vmem:[#allocation17] sm:$0x1] %vm1247, %v1300
          %v1304 = vld [vmem:[%s4] sm:$0x1]
          %v1305 = vsub.f32 %v1268, %v1304
          %v1306 = vand.u32 2147483647, %v1305
          %v1307 = vsel %vm589, %v1306, 0.0
          %1308 = vadd.xlane.f32.xlu0 %v1307
          %v1309 = vpop.xlane.xlu0 %1308
          %v1310 = vrot.slane %v1309, 4
          %v1311 = vadd.f32 %v1309, %v1310
          %v1312 = vrot.slane %v1311, 2
          %v1313 = vadd.f32 %v1311, %v1312
          %v1314 = vrot.slane %v1313, 1
          %v1315 = vadd.f32 %v1313, %v1314
          %s1316 = vtos %v1315
          %v1317 = vstv %s1316
          %v1318 = vrcp.pop 13.0
          %v1319 = vmul.f32 %v1317, %v1318
          %vm1320 = vcmask 0
          %1321 = vst.msk [vmem:[#allocation18] sm:$0x1] %vm1320, %v1319
          %v1322 = vld [vmem:[%s5] sm:$0x1]
          %v1323 = vsub.f32 %v1284, %v1322
          %v1324 = vand.u32 2147483647, %v1323
          %v1325 = vsel %vm696, %v1324, 0.0
          %1326 = vadd.xlane.f32.xlu0 %v1325
          %v1327 = vpop.xlane.xlu0 %1326
          %v1328 = vrot.slane %v1327, 4
          %v1329 = vadd.f32 %v1327, %v1328
          %v1330 = vrot.slane %v1329, 2
          %v1331 = vadd.f32 %v1329, %v1330
          %v1332 = vrot.slane %v1331, 1
          %v1333 = vadd.f32 %v1331, %v1332
          %s1334 = vtos %v1333
          %v1335 = vstv %s1334
          %v1336 = vrcp.pop 4.0
          %v1337 = vmul.f32 %v1335, %v1336
          %1338 = vst.msk [vmem:[#allocation20] sm:$0x1] %vm1320, %v1337
          %v1339 = vld [vmem:[%s6] sm:$0x1]
          %v1340 = vsub.f32 %v1300, %v1339
          %v1341 = vand.u32 2147483647, %v1340
          %v1342 = vsel %vm1247, %v1341, 0.0
          %1343 = vadd.xlane.f32.xlu0 %v1342
          %v1344 = vpop.xlane.xlu0 %1343
          %v1345 = vrot.slane %v1344, 4
          %v1346 = vadd.f32 %v1344, %v1345
          %v1347 = vrot.slane %v1346, 2
          %v1348 = vadd.f32 %v1346, %v1347
          %v1349 = vrot.slane %v1348, 1
          %v1350 = vadd.f32 %v1348, %v1349
          %s1351 = vtos %v1350
          %v1352 = vstv %s1351
          %v1353 = vrcp.pop 5.0
          %v1354 = vmul.f32 %v1352, %v1353
          %1355 = vst.msk [vmem:[#allocation21] sm:$0x1] %vm1320, %v1354
        $region64: #{tpu_custom_call.1} parent=43 // pred_fallthru
          _
        // Predicated region
        $region65: #{tpu_custom_call.1} parent=43 // pred_check
          %p1356 = pneg %p189
        $region66: #{tpu_custom_call.1} parent=43 // pred_check_branch
          %1358 = sbr.rel (%p1356) target = $region68
        $region67: #{tpu_custom_call.1} parent=43 // pred_region
          %s1360 = ssub.s32 16, 16
          %1361 = vsyncadd [#allocation10], %s1360
          %s1363 = sshll.u32 [#allocation14], 4
          %s1364 = int_to_ptr.vmem [resolvable:$true] %s1363
          %1366 = dma.vmem_to_hbm [thread:$0]  %s1364, 16, %s7, [#allocation10]
        $region68: #{tpu_custom_call.1} parent=43 // pred_fallthru
          _
        // Predicated region
        $region69: #{tpu_custom_call.1} parent=43 // pred_check
          %p1367 = pneg %p210
        $region70: #{tpu_custom_call.1} parent=43 // pred_check_branch
          %1369 = sbr.rel (%p1367) target = $region72
        $region71: #{tpu_custom_call.1} parent=43 // pred_region
          %s1371 = ssub.s32 16, 16
          %1372 = vsyncadd [#allocation16], %s1371
          %s1374 = sshll.u32 [#allocation15], 4
          %s1375 = int_to_ptr.vmem [resolvable:$true] %s1374
          %1377 = dma.vmem_to_hbm [thread:$0]  %s1375, 16, %s8, [#allocation16]
        $region72: #{tpu_custom_call.1} parent=43 // pred_fallthru
          _
        // Predicated region
        $region73: #{tpu_custom_call.1} parent=43 // pred_check
          %p1378 = pneg %p231
        $region74: #{tpu_custom_call.1} parent=43 // pred_check_branch
          %1380 = sbr.rel (%p1378) target = $region76
        $region75: #{tpu_custom_call.1} parent=43 // pred_region
          %s1382 = ssub.s32 16, 16
          %1383 = vsyncadd [#allocation16], %s1382
          %s1385 = sshll.u32 [#allocation17], 4
          %s1386 = int_to_ptr.vmem [resolvable:$true] %s1385
          %1388 = dma.vmem_to_hbm [thread:$0]  %s1386, 16, %s9, [#allocation16]
        $region76: #{tpu_custom_call.1} parent=43 // pred_fallthru
          _
        // Predicated region
        $region77: #{tpu_custom_call.1} parent=43 // pred_check
          %p1389 = pneg %p252
        $region78: #{tpu_custom_call.1} parent=43 // pred_check_branch
          %1391 = sbr.rel (%p1389) target = $region80
        $region79: #{tpu_custom_call.1} parent=43 // pred_region
          %s1393 = ssub.s32 16, 16
          %1394 = vsyncadd [#allocation19], %s1393
          %s1396 = sshll.u32 [#allocation18], 4
          %s1397 = int_to_ptr.vmem [resolvable:$true] %s1396
          %1399 = dma.vmem_to_hbm [thread:$0]  %s1397, 16, %s10, [#allocation19]
        $region80: #{tpu_custom_call.1} parent=43 // pred_fallthru
          _
        // Predicated region
        $region81: #{tpu_custom_call.1} parent=43 // pred_check
          %p1400 = pneg %p273
        $region82: #{tpu_custom_call.1} parent=43 // pred_check_branch
          %1402 = sbr.rel (%p1400) target = $region84
        $region83: #{tpu_custom_call.1} parent=43 // pred_region
          %s1404 = ssub.s32 16, 16
          %1405 = vsyncadd [#allocation19], %s1404
          %s1407 = sshll.u32 [#allocation20], 4
          %s1408 = int_to_ptr.vmem [resolvable:$true] %s1407
          %1410 = dma.vmem_to_hbm [thread:$0]  %s1408, 16, %s11, [#allocation19]
        $region84: #{tpu_custom_call.1} parent=43 // pred_fallthru
          _
        // Predicated region
        $region85: #{tpu_custom_call.1} parent=43 // pred_check
          %p1411 = pneg %p294
        $region86: #{tpu_custom_call.1} parent=43 // pred_check_branch
          %1413 = sbr.rel (%p1411) target = $region88
        $region87: #{tpu_custom_call.1} parent=43 // pred_region
          %s1415 = ssub.s32 16, 16
          %1416 = vsyncadd [#allocation22], %s1415
          %s1418 = sshll.u32 [#allocation21], 4
          %s1419 = int_to_ptr.vmem [resolvable:$true] %s1418
          %1421 = dma.vmem_to_hbm [thread:$0]  %s1419, 16, %s12, [#allocation22]
        $region88: #{tpu_custom_call.1} parent=43 // pred_fallthru
          _
        // Predicated region
        $region89: #{tpu_custom_call.1} parent=43 // pred_check
          %p1422 = pneg %p189
        $region90: #{tpu_custom_call.1} parent=43 // pred_check_branch
          %1424 = sbr.rel (%p1422) target = $region92
        $region91: #{tpu_custom_call.1} parent=43 // pred_region
          %1425 = dma.done [#allocation10], 16
        $region92: #{tpu_custom_call.1} parent=43 // pred_fallthru
          _
        // Predicated region
        $region93: #{tpu_custom_call.1} parent=43 // pred_check
          %p1426 = pneg %p210
        $region94: #{tpu_custom_call.1} parent=43 // pred_check_branch
          %1428 = sbr.rel (%p1426) target = $region96
        $region95: #{tpu_custom_call.1} parent=43 // pred_region
          %1429 = dma.done [#allocation16], 16
        $region96: #{tpu_custom_call.1} parent=43 // pred_fallthru
          _
        // Predicated region
        $region97: #{tpu_custom_call.1} parent=43 // pred_check
          %p1430 = pneg %p231
        $region98: #{tpu_custom_call.1} parent=43 // pred_check_branch
          %1432 = sbr.rel (%p1430) target = $region100
        $region99: #{tpu_custom_call.1} parent=43 // pred_region
          %1433 = dma.done [#allocation16], 16
        $region100: #{tpu_custom_call.1} parent=43 // pred_fallthru
          _
        // Predicated region
        $region101: #{tpu_custom_call.1} parent=43 // pred_check
          %p1434 = pneg %p252
        $region102: #{tpu_custom_call.1} parent=43 // pred_check_branch
          %1436 = sbr.rel (%p1434) target = $region104
        $region103: #{tpu_custom_call.1} parent=43 // pred_region
          %1437 = dma.done [#allocation19], 16
        $region104: #{tpu_custom_call.1} parent=43 // pred_fallthru
          _
        // Predicated region
        $region105: #{tpu_custom_call.1} parent=43 // pred_check
          %p1438 = pneg %p273
        $region106: #{tpu_custom_call.1} parent=43 // pred_check_branch
          %1440 = sbr.rel (%p1438) target = $region108
        $region107: #{tpu_custom_call.1} parent=43 // pred_region
          %1441 = dma.done [#allocation19], 16
        $region108: #{tpu_custom_call.1} parent=43 // pred_fallthru
          _
        // Predicated region
        $region109: #{tpu_custom_call.1} parent=43 // pred_check
          %p1442 = pneg %p294
        $region110: #{tpu_custom_call.1} parent=43 // pred_check_branch
          %1444 = sbr.rel (%p1442) target = $region112
        $region111: #{tpu_custom_call.1} parent=43 // pred_region
          %1445 = dma.done [#allocation22], 16
        $region112: #{tpu_custom_call.1} parent=43 // pred_fallthru
          _
      $region44: #{tpu_custom_call.1} parent=5 // pred_fallthru
        _
      %p1446 = scmp.le.s32.totalorder 2, %s30
      // Predicated region
      $region113: #{tpu_custom_call.1} parent=5 // pred_check
        %p1447 = pneg %p1446
      $region114: #{tpu_custom_call.1} parent=5 // pred_check_branch
        %1449 = sbr.rel (%p1447) target = $region116
      $region115: #{tpu_custom_call.1} parent=5 // pred_region
        %s1450 = ssub.s32 %s30, 2
      $region116: #{tpu_custom_call.1} parent=5 // pred_fallthru
        _
    $region6: #{tpu_custom_call.1} parent=1 // loop_footer
      %s34 = sadd.s32 1, %s30
    $region7: #{tpu_custom_call.1} parent=1 // loop_footer_branch
      %29 = sbr.rel target = $region3
    $region8: #{tpu_custom_call.1} parent=1 // loop_exit
      _
    %1451 = vsyncpa [#allocation9], 1
    %s1452 = scalar_lea.sflag [#allocation9], 1
    %1453 = vsyncpa %s1452, 1
    %1454 = vsyncpa [#allocation12], 1
    %s1455 = scalar_lea.sflag [#allocation12], 1
    %1456 = vsyncpa %s1455, 1
    %1457 = vsyncpa [#allocation10], 1
    %s1458 = scalar_lea.sflag [#allocation10], 1
    %1459 = vsyncpa %s1458, 1
    %1460 = vsyncpa [#allocation16], 1
    %1461 = vsyncpa [#allocation19], 1
    %1462 = vsyncpa [#allocation22], 1

</llo_original>
